<compile_context>
chip_gen: v5e
topology: v5e:2x2
jax: 0.10.0
libtpu: 0.0.40
codegen_flags: <defaults>
</compile_context>

<pallas_src>
import functools
import numpy as np
import jax
import jax.numpy as jnp
from jax.experimental import pallas as pl
from jax.experimental.pallas import tpu as pltpu

# ------------------------- model constants -------------------------
NUM_BODY_JOINTS = 23
NUM_JOINTS = NUM_BODY_JOINTS + 1  # 24 (global + body)
# SMPL kinematic tree (parents[0] = -1)
PARENTS = np.array(
    [-1, 0, 0, 0, 1, 2, 3, 4, 5, 6, 7, 8, 9, 9, 9, 12, 13, 14, 16, 17, 18, 19,
     20, 21], dtype=np.int64)


def _gcd(a, b):
    while b:
        a, b = b, a % b
    return a


# ------------------------- Pallas kernels -------------------------
def _blend_kernel(coeffs_ref, vt_ref, dirs_ref, out_ref):
    # out = v_template + [betas | pose_feature] @ [shapedirs ; posedirs]
    # coeffs_ref: (B, C) f32   vt_ref: (1, tile_d) f32   dirs_ref: (C, tile_d)
    dirs = dirs_ref[...]
    # match the dirs storage dtype (bf16 dirs -> native MXU bf16 path);
    # accumulation stays f32 via preferred_element_type.
    coeffs = coeffs_ref[...].astype(dirs.dtype)
    out_ref[...] = vt_ref[...] + jnp.dot(coeffs, dirs,
                                         preferred_element_type=jnp.float32)


def pallas_blend(coeffs, vt_flat, dirs, tile_d):
    """Fused shape+pose blend; output is (B, 3*V_pad) coordinate-major flat."""
    B, C = coeffs.shape
    D = dirs.shape[1]
    assert D % tile_d == 0, "constants are padded at setup so this always holds"
    grid = (D // tile_d,)
    # Explicit VMEM budget: double-buffered dirs tile dominates.  Keeps the
    # pipeline intact on v5e (16 MiB default scoped limit) even for f32 dirs,
    # and stays far below v7x's 64 MiB physical VMEM for our tile sizes.
    dirs_tile_bytes = C * tile_d * dirs.dtype.itemsize
    io_tile_bytes = (1 + B) * tile_d * 4
    vmem_limit = int(2.0 * (dirs_tile_bytes + io_tile_bytes) * 1.5) + (1 << 20)
    vmem_limit = min(max(vmem_limit, 32 * 1024 * 1024), 96 * 1024 * 1024)
    return pl.pallas_call(
        _blend_kernel,
        out_shape=jax.ShapeDtypeStruct((B, D), jnp.float32),
        grid=grid,
        in_specs=[
            pl.BlockSpec((B, C), lambda d: (0, 0)),        # resident across grid
            pl.BlockSpec((1, tile_d), lambda d: (0, d)),
            pl.BlockSpec((C, tile_d), lambda d: (0, d)),
        ],
        out_specs=pl.BlockSpec((B, tile_d), lambda d: (0, d)),
        compiler_params=pltpu.CompilerParams(
            dimension_semantics=("parallel",),
            vmem_limit_bytes=vmem_limit),
    )(coeffs, vt_flat, dirs)


def _skin_kernel(a_ref, w_ref, vp_ref, out_ref):
    # a_ref:  (B*12, J+1) f32  -- per batch, rows grouped by matrix COLUMN:
    #         [R00,R10,R20, R01,R11,R21, R02,R12,R22, t0,t1,t2]; the extra
    #         (J+1)-th column is [0]*9 + [transl_x, transl_y, transl_z].
    # w_ref:  (J+1, TV) f32    -- transposed lbs weights + a trailing ones row
    #                             (so transl is applied exactly).
    # vp_ref/out_ref: (B, 3, TV)
    w = w_ref[...]
    # one MXU dot per tile for the whole batch
    t = jnp.dot(a_ref[...], w, preferred_element_type=jnp.float32)  # (B*12,TV)
    vp = vp_ref[...]                                                 # (B,3,TV)
    B = vp_ref.shape[0]
    for b in range(B):                       # static unroll, B is small
        x = vp[b, 0:1, :]
        y = vp[b, 1:2, :]
        z = vp[b, 2:3, :]
        tb = t[12 * b:12 * b + 12, :]        # this batch's 12 rows
        # column-grouped FMA: one (3, TV) store per batch, no 1-sublane stores
        out_ref[b, :, :] = (tb[0:3, :] * x + tb[3:6, :] * y
                            + tb[6:9, :] * z + tb[9:12, :])


def pallas_skin(a_aug, w_aug, vp_cm, tile_v):
    """LBS + homogeneous transform apply + translation, output (B, 3, V_pad)."""
    B12, Ja = a_aug.shape
    B, _, V_pad = vp_cm.shape
    assert V_pad % tile_v == 0
    nv = V_pad // tile_v                      # >= 2 so v7x megacore splits
    return pl.pallas_call(
        _skin_kernel,
        out_shape=jax.ShapeDtypeStruct((B, 3, V_pad), jnp.float32),
        grid=(nv,),
        in_specs=[
            pl.BlockSpec((B12, Ja), lambda v: (0, 0)),          # resident
            pl.BlockSpec((Ja, tile_v), lambda v: (0, v)),       # W^T (+ ones)
            pl.BlockSpec((B, 3, tile_v), lambda v: (0, 0, v)),  # v_posed
        ],
        out_specs=pl.BlockSpec((B, 3, tile_v), lambda v: (0, 0, v)),
        compiler_params=pltpu.CompilerParams(
            dimension_semantics=("parallel",)),
    )(a_aug, w_aug, vp_cm)


# ------------------------- setup-time constant packing -------------------------
def prepare_smpl_constants(v_template, shapedirs, posedirs, J_regressor,
                           lbs_weights, n_blend_tiles=4, n_skin_tiles=2,
                           blend_dtype=jnp.bfloat16):
    """One-time repack of SMPL buffers (done in float64 numpy for accuracy).

    - coordinate-major, lane-padded blend dirs   (NB+P, 3*V_pad), bf16 default
    - folded joint regressor (J_template, J_shapedirs), f32
    - transposed, lane-padded skinning weights + ones row (J+1, V_pad), f32
    V is padded so that both the blend d-axis (n_blend_tiles steps) and the
    skin v-axis (n_skin_tiles steps) tile on 128-lane boundaries.
    """
    vt = np.asarray(v_template, np.float64)              # (V, 3)
    sd = np.asarray(shapedirs, np.float64)                # (V, 3, NB)
    pd = np.asarray(posedirs, np.float64)                  # (P, V*3)
    jr = np.asarray(J_regressor, np.float64)              # (J, V)
    w = np.asarray(lbs_weights, np.float64)                # (V, J)

    V, _, NB = sd.shape
    P = pd.shape[0]

    # V_pad % (128*n_skin_tiles) == 0  and  (3*V_pad) % (128*n_blend_tiles) == 0
    skin_req = 128 * n_skin_tiles
    blend_req = (128 * n_blend_tiles) // _gcd(3, n_blend_tiles)
    pad_base = skin_req * blend_req // _gcd(skin_req, blend_req)
    V_pad = ((V + pad_base - 1) // pad_base) * pad_base
    pad = V_pad - V

    # coordinate-major (.., 3, V) so the blend output is already (B, 3, V)
    sd_cm = np.transpose(sd, (2, 1, 0))                              # (NB,3,V)
    pd_cm = np.transpose(pd.reshape(P, V, 3), (0, 2, 1))             # (P,3,V)
    vt_cm = vt.T[None]                                               # (1,3,V)
    if pad:
        zpad = ((0, 0), (0, 0), (0, pad))
        sd_cm = np.pad(sd_cm, zpad)
        pd_cm = np.pad(pd_cm, zpad)
        vt_cm = np.pad(vt_cm, zpad)
    blend_dirs = np.concatenate([sd_cm.reshape(NB, 3 * V_pad),
                                 pd_cm.reshape(P, 3 * V_pad)], axis=0)

    # fold joint regression: j = J_template + betas @ J_shapedirs
    J_template = jr @ vt                                             # (J, 3)
    J_shapedirs = np.einsum('jv,vkl->jkl', jr, sd)                   # (J,3,NB)
    J_shapedirs = J_shapedirs.reshape(-1, NB).T                      # (NB, J*3)

    w_t = w.T                                                        # (J, V)
    if pad:
        w_t = np.pad(w_t, ((0, 0), (0, pad)))
    # trailing ones row: the skin kernel's extra "joint" carries transl exactly
    w_aug = np.concatenate([w_t, np.ones((1, V_pad))], axis=0)       # (J+1,Vp)

    return dict(
        blend_dirs=jnp.asarray(blend_dirs, blend_dtype),
        v_template_cm=jnp.asarray(vt_cm.reshape(1, 3 * V_pad), jnp.float32),
        J_template=jnp.asarray(J_template, jnp.float32),
        J_shapedirs=jnp.asarray(J_shapedirs, jnp.float32),
        lbs_weights_t=jnp.asarray(w_aug, jnp.float32),   # f32: skin stays f32
    )


# ------------------------- plain-JAX glue -------------------------
def batch_rodrigues(aa):
    """Axis-angle (..., 3) -> rotation matrices (..., 3, 3)."""
    angle = jnp.sqrt(jnp.sum(aa * aa, axis=-1, keepdims=True) + 1e-12)
    axis = aa / angle
    cos = jnp.cos(angle)[..., None]
    sin = jnp.sin(angle)[..., None]
    rx, ry, rz = axis[..., 0], axis[..., 1], axis[..., 2]
    zeros = jnp.zeros_like(rx)
    k = jnp.stack([zeros, -rz, ry, rz, zeros, -rx, -ry, rx, zeros],
                  axis=-1).reshape(aa.shape[:-1] + (3, 3))
    ident = jnp.eye(3, dtype=aa.dtype)
    return ident + sin * k + (1.0 - cos) * jnp.matmul(k, k)


def batch_rigid_transform(rot_mats, joints, parents):
    """Sequential kinematic chain (tiny; plain JAX)."""
    # TODO(synk): 24-step parent-chain 4x4 composition stays in plain JAX
    # (inherently sequential, negligible compute).
    B, Jn = joints.shape[:2]
    dtype = joints.dtype
    joints_h = joints[..., None]                                   # (B,J,3,1)
    rel = jnp.concatenate(
        [joints_h[:, :1], joints_h[:, 1:] - joints_h[:, parents[1:]]], axis=1)
    top = jnp.concatenate([rot_mats, rel], axis=-1)                # (B,J,3,4)
    bottom = jnp.broadcast_to(
        jnp.array([0., 0., 0., 1.], dtype)[None, None, None, :], (B, Jn, 1, 4))
    tmat = jnp.concatenate([top, bottom], axis=-2)                 # (B,J,4,4)

    chain = [tmat[:, 0]]
    for i in range(1, Jn):
        chain.append(jnp.matmul(chain[int(parents[i])], tmat[:, i]))
    transforms = jnp.stack(chain, axis=1)                          # (B,J,4,4)

    posed_joints = transforms[:, :, :3, 3]
    joints_homo = jnp.concatenate(
        [joints_h, jnp.zeros((B, Jn, 1, 1), dtype)], axis=2)       # (B,J,4,1)
    init_bone = jnp.matmul(transforms, joints_homo)                # (B,J,4,1)
    init_bone = jnp.pad(init_bone, ((0, 0), (0, 0), (0, 0), (3, 0)))
    rel_transforms = transforms - init_bone
    return posed_joints, rel_transforms


def smpl_layer_forward(betas, body_pose, global_orient, transl,
                       extra_vertex_ids, consts, *,
                       parents, num_verts, n_blend_tiles=4, n_skin_tiles=2):
    """SMPLLayer.forward with pose2rot=False. Returns (vertices, joints)."""
    B = betas.shape[0]
    Jn = parents.shape[0]
    dtype = jnp.float32

    # static tile sizes derived from the packed constants
    D = consts['blend_dirs'].shape[1]        # 3 * V_pad
    tile_d = D // n_blend_tiles
    V_pad = D // 3
    tile_v = V_pad // n_skin_tiles

    full_pose = jnp.concatenate(
        [global_orient.reshape(B, 1, 3, 3),
         body_pose.reshape(B, Jn - 1, 3, 3)], axis=1)              # (B,24,3,3)

    ident = jnp.eye(3, dtype=dtype)
    pose_feature = (full_pose[:, 1:] - ident).reshape(B, -1)       # (B,207)
    coeffs = jnp.concatenate([betas, pose_feature], axis=1)        # (B,217)

    # --- Pallas kernel 1: fused shape+pose blend, coordinate-major output ---
    v_posed_flat = pallas_blend(coeffs, consts['v_template_cm'],
                                consts['blend_dirs'], tile_d)      # (B, 3*V_pad)
    v_posed_cm = v_posed_flat.reshape(B, 3, V_pad)                 # free reshape

    # --- joint regression: constant-folded, plain JAX (tiny) ---
    j_pos = consts['J_template'][None] + \
        (betas @ consts['J_shapedirs']).reshape(B, Jn, 3)          # (B,24,3)

    # --- kinematic chain (plain JAX) ---
    j_transformed, rel_a = batch_rigid_transform(full_pose, j_pos, parents)

    # --- Pallas kernel 2: LBS + transform apply + translation fused ---
    # Rows grouped by matrix COLUMN: [R00,R10,R20, R01,R11,R21, R02,R12,R22,
    # t0,t1,t2]; extra column = [0]*9 + transl pairs with the ones row of the
    # augmented weight matrix (exact translation add, f32 end to end).
    a_cols = rel_a[:, :, :3, :].transpose(0, 3, 2, 1).reshape(B, 12, Jn)
    extra_col = jnp.concatenate(
        [jnp.zeros((B, 9), dtype), transl.astype(dtype)], axis=1)[:, :, None]
    a_aug = jnp.concatenate([a_cols, extra_col], axis=2).reshape(B * 12, Jn + 1)

    verts_cm = pallas_skin(a_aug, consts['lbs_weights_t'], v_posed_cm,
                           tile_v)                                  # (B,3,V_pad)
    vertices = verts_cm[:, :, :num_verts].transpose(0, 2, 1)        # (B,V,3)

    # --- VertexJointSelector (gather, plain JAX glue) ---
    # vertices already include transl; j_transformed still needs it.
    extra = jnp.take(vertices, extra_vertex_ids, axis=1)
    joints = jnp.concatenate([j_transformed + transl[:, None, :], extra],
                             axis=1)
    return vertices, joints


def reference_forward(betas, body_pose, global_orient, transl,
                      v_template, shapedirs, posedirs, J_regressor,
                      parents, lbs_weights, extra_vertex_ids):
    """Pure-jnp reference (mirrors smplx.lbs with pose2rot=False)."""
    B = betas.shape[0]
    V = v_template.shape[0]
    Jn = J_regressor.shape[0]
    full_pose = jnp.concatenate(
        [global_orient.reshape(B, 1, 3, 3),
         body_pose.reshape(B, Jn - 1, 3, 3)], axis=1)
    hp = jax.lax.Precision.HIGHEST
    blend = jnp.einsum('bl,mkl->bmk', betas, shapedirs, precision=hp)
    v_shaped = v_template[None] + blend
    j_pos = jnp.einsum('jv,bvk->bjk', J_regressor, v_shaped, precision=hp)
    ident = jnp.eye(3, dtype=jnp.float32)
    pose_feature = (full_pose[:, 1:] - ident).reshape(B, -1)
    pose_offsets = jnp.matmul(pose_feature, posedirs,
                              precision=hp).reshape(B, V, 3)
    v_posed = v_shaped + pose_offsets
    j_transformed, rel_a = batch_rigid_transform(full_pose, j_pos, parents)
    W = jnp.broadcast_to(lbs_weights[None], (B, V, Jn))
    T = jnp.einsum('bvj,bjk->bvk', W, rel_a.reshape(B, Jn, 16),
                   precision=hp).reshape(B, V, 4, 4)
    homo = jnp.concatenate([v_posed, jnp.ones((B, V, 1), jnp.float32)], -1)
    verts = jnp.einsum('bvij,bvj->bvi', T, homo, precision=hp)[..., :3]
    extra = jnp.take(verts, extra_vertex_ids, axis=1)
    joints = jnp.concatenate([j_transformed, extra], axis=1)
    joints = joints + transl[:, None, :]
    verts = verts + transl[:, None, :]
    return verts, joints


# ------------------------- main -------------------------
if __name__ == "__main__":
    key = jax.random.PRNGKey(0)
    # V deliberately NOT a multiple of the pad base so the padding path is tested
    B, V, Jn, NB = 2, 1000, NUM_JOINTS, 10
    P = (Jn - 1) * 9  # 207 pose-blend features

    ks = jax.random.split(key, 10)
    # deterministic synthetic SMPL buffers (shapes per SMPL.__init__)
    v_template = jax.random.uniform(ks[0], (V, 3), jnp.float32, -1.0, 1.0)
    shapedirs = 0.03 * jax.random.normal(ks[1], (V, 3, NB), jnp.float32)
    posedirs = 0.01 * jax.random.normal(ks[2], (P, V * 3), jnp.float32)
    J_regressor = jax.nn.softmax(
        jax.random.normal(ks[3], (Jn, V), jnp.float32), axis=-1)
    lbs_weights = jax.nn.softmax(
        4.0 * jax.random.normal(ks[4], (V, Jn), jnp.float32), axis=-1)
    extra_vertex_ids = jnp.asarray(np.arange(21) * 37 + 5, dtype=jnp.int32)

    # forward inputs (rotation-matrix format, as SMPLLayer expects)
    betas = jax.random.normal(ks[5], (B, NB), jnp.float32)
    global_orient = batch_rodrigues(
        0.3 * jax.random.normal(ks[6], (B, 1, 3), jnp.float32))
    body_pose = batch_rodrigues(
        0.3 * jax.random.normal(ks[7], (B, NUM_BODY_JOINTS, 3), jnp.float32))
    transl = jax.random.normal(ks[8], (B, 3), jnp.float32)

    # pure-jnp reference
    ref_v, ref_j = reference_forward(
        betas, body_pose, global_orient, transl,
        v_template, shapedirs, posedirs, J_regressor, PARENTS, lbs_weights,
        extra_vertex_ids)

    forward = jax.jit(functools.partial(
        smpl_layer_forward, parents=PARENTS, num_verts=V,
        n_blend_tiles=4, n_skin_tiles=2))

    # --- default path: bf16 blend_dirs, f32 everywhere else ---
    consts_bf16 = prepare_smpl_constants(
        v_template, shapedirs, posedirs, J_regressor, lbs_weights)
    vertices, joints = forward(betas, body_pose, global_orient, transl,
                               extra_vertex_ids, consts_bf16)
    vertices = jax.block_until_ready(vertices)
    joints = jax.block_until_ready(joints)
    np.testing.assert_allclose(np.asarray(vertices), np.asarray(ref_v),
                               rtol=2e-2, atol=2e-2)
    np.testing.assert_allclose(np.asarray(joints), np.asarray(ref_j),
                               rtol=2e-2, atol=2e-2)
    assert vertices.shape == (B, V, 3)
    assert joints.shape == (B, Jn + extra_vertex_ids.shape[0], 3)

    # --- f32 blend_dirs option (tighter tolerance) ---
    consts_f32 = prepare_smpl_constants(
        v_template, shapedirs, posedirs, J_regressor, lbs_weights,
        blend_dtype=jnp.float32)
    v_f32, j_f32 = forward(betas, body_pose, global_orient, transl,
                           extra_vertex_ids, consts_f32)
    v_f32 = jax.block_until_ready(v_f32)
    j_f32 = jax.block_until_ready(j_f32)
    # tolerance 1e-2: the MXU default f32 matmul path is not bit-matched to the
    # Precision.HIGHEST XLA reference.
    np.testing.assert_allclose(np.asarray(v_f32), np.asarray(ref_v),
                               rtol=1e-2, atol=1e-2)
    np.testing.assert_allclose(np.asarray(j_f32), np.asarray(ref_j),
                               rtol=1e-2, atol=1e-2)

    print("KERNEL_OK")
</pallas_src>

<mosaic_0001>
module attributes {stable_mosaic.version = 11 : i64} {
  func.func @_blend_kernel(%arg0: i32, %arg1: memref<2x217xf32, #tpu.memory_space<vmem>>, %arg2: memref<1x768xf32, #tpu.memory_space<vmem>>, %arg3: memref<217x768xbf16, #tpu.memory_space<vmem>>, %arg4: memref<2x768xf32, #tpu.memory_space<vmem>>) attributes {dimension_semantics = [#tpu.dimension_semantics<parallel>], iteration_bounds = array<i64: 4>, scalar_prefetch = 0 : i64, scratch_operands = 0 : i64, tpu.core_type = #tpu.core_type<tc>, window_params = [{pipeline_mode = #tpu.pipeline_mode<synchronous>, transform_indices = @transform_0, window_bounds = array<i64: 2, 217>}, {transform_indices = @transform_1, window_bounds = array<i64: 1, 768>}, {transform_indices = @transform_2, window_bounds = array<i64: 217, 768>}, {transform_indices = @transform_3, window_bounds = array<i64: 2, 768>}]} {
    %c0 = arith.constant 0 : index
    %c0_0 = arith.constant 0 : index
    %0 = vector.load %arg3[%c0, %c0_0] : memref<217x768xbf16, #tpu.memory_space<vmem>>, vector<217x768xbf16>
    %c0_1 = arith.constant 0 : index
    %c0_2 = arith.constant 0 : index
    %1 = vector.load %arg1[%c0_1, %c0_2] : memref<2x217xf32, #tpu.memory_space<vmem>>, vector<2x217xf32>
    %2 = arith.truncf %1 : vector<2x217xf32> to vector<2x217xbf16>
    %c0_3 = arith.constant 0 : index
    %c0_4 = arith.constant 0 : index
    %3 = vector.load %arg2[%c0_3, %c0_4] : memref<1x768xf32, #tpu.memory_space<vmem>>, vector<1x768xf32>
    %cst = arith.constant dense<0.000000e+00> : vector<2x768xf32>
    %4 = tpu.matmul %2, %0, %cst {dimension_numbers = #tpu.dot_dimension_numbers<[1], [0], [0], [1], [0, 0, 1, 1], [], []>} : vector<2x217xbf16>, vector<217x768xbf16>, vector<2x768xf32> -> vector<2x768xf32>
    %5 = vector.broadcast %3 : vector<1x768xf32> to vector<2x768xf32>
    %6 = arith.addf %5, %4 : vector<2x768xf32>
    %c0_5 = arith.constant 0 : index
    %c0_6 = arith.constant 0 : index
    %7 = vector.load %arg4[%c0_5, %c0_6] : memref<2x768xf32, #tpu.memory_space<vmem>>, vector<2x768xf32>
    tpu.vector_store %arg4[%c0_5, %c0_6], %6 {strides = array<i32>} : memref<2x768xf32, #tpu.memory_space<vmem>>, vector<2x768xf32>,
    return
  }
  func.func @transform_0(%arg0: i32) -> (i32, i32) {
    %c0_i32 = arith.constant 0 : i32
    %c0_i32_0 = arith.constant 0 : i32
    %c0_i32_1 = arith.constant 0 : i32
    return %c0_i32, %c0_i32_0 : i32, i32
  }
  func.func @transform_1(%arg0: i32) -> (i32, i32) {
    %c0_i32 = arith.constant 0 : i32
    %c0_i32_0 = arith.constant 0 : i32
    return %c0_i32, %arg0 : i32, i32
  }
  func.func @transform_2(%arg0: i32) -> (i32, i32) {
    %c0_i32 = arith.constant 0 : i32
    %c0_i32_0 = arith.constant 0 : i32
    return %c0_i32, %arg0 : i32, i32
  }
  func.func @transform_3(%arg0: i32) -> (i32, i32) {
    %c0_i32 = arith.constant 0 : i32
    %c0_i32_0 = arith.constant 0 : i32
    return %c0_i32, %arg0 : i32, i32
  }
}

module attributes {stable_mosaic.version = 11 : i64} {
  func.func @_skin_kernel(%arg0: i32, %arg1: memref<24x25xf32, #tpu.memory_space<vmem>>, %arg2: memref<25x512xf32, #tpu.memory_space<vmem>>, %arg3: memref<2x3x512xf32, #tpu.memory_space<vmem>>, %arg4: memref<2x3x512xf32, #tpu.memory_space<vmem>>) attributes {dimension_semantics = [#tpu.dimension_semantics<parallel>], iteration_bounds = array<i64: 2>, scalar_prefetch = 0 : i64, scratch_operands = 0 : i64, tpu.core_type = #tpu.core_type<tc>, window_params = [{pipeline_mode = #tpu.pipeline_mode<synchronous>, transform_indices = @transform_0, window_bounds = array<i64: 24, 25>}, {transform_indices = @transform_1, window_bounds = array<i64: 25, 512>}, {transform_indices = @transform_2, window_bounds = array<i64: 2, 3, 512>}, {transform_indices = @transform_3, window_bounds = array<i64: 2, 3, 512>}]} {
    %c0 = arith.constant 0 : index
    %c0_0 = arith.constant 0 : index
    %0 = vector.load %arg2[%c0, %c0_0] : memref<25x512xf32, #tpu.memory_space<vmem>>, vector<25x512xf32>
    %c0_1 = arith.constant 0 : index
    %c0_2 = arith.constant 0 : index
    %1 = vector.load %arg1[%c0_1, %c0_2] : memref<24x25xf32, #tpu.memory_space<vmem>>, vector<24x25xf32>
    %cst = arith.constant dense<0.000000e+00> : vector<24x512xf32>
    %2 = tpu.matmul %1, %0, %cst {dimension_numbers = #tpu.dot_dimension_numbers<[1], [0], [0], [1], [0, 0, 1, 1], [], []>} : vector<24x25xf32>, vector<25x512xf32>, vector<24x512xf32> -> vector<24x512xf32>
    %c0_3 = arith.constant 0 : index
    %c0_4 = arith.constant 0 : index
    %c0_5 = arith.constant 0 : index
    %3 = vector.load %arg3[%c0_3, %c0_4, %c0_5] : memref<2x3x512xf32, #tpu.memory_space<vmem>>, vector<2x3x512xf32>
    %4 = vector.extract_strided_slice %3 {offsets = [0, 0, 0], sizes = [1, 1, 512], strides = [1, 1, 1]} : vector<2x3x512xf32> to vector<1x1x512xf32>
    %5 = vector.shape_cast %4 : vector<1x1x512xf32> to vector<1x512xf32>
    %6 = vector.extract_strided_slice %3 {offsets = [0, 1, 0], sizes = [1, 1, 512], strides = [1, 1, 1]} : vector<2x3x512xf32> to vector<1x1x512xf32>
    %7 = vector.shape_cast %6 : vector<1x1x512xf32> to vector<1x512xf32>
    %8 = vector.extract_strided_slice %3 {offsets = [0, 2, 0], sizes = [1, 1, 512], strides = [1, 1, 1]} : vector<2x3x512xf32> to vector<1x1x512xf32>
    %9 = vector.shape_cast %8 : vector<1x1x512xf32> to vector<1x512xf32>
    %10 = vector.extract_strided_slice %2 {offsets = [0, 0], sizes = [12, 512], strides = [1, 1]} : vector<24x512xf32> to vector<12x512xf32>
    %11 = vector.extract_strided_slice %10 {offsets = [0, 0], sizes = [3, 512], strides = [1, 1]} : vector<12x512xf32> to vector<3x512xf32>
    %12 = vector.broadcast %5 : vector<1x512xf32> to vector<3x512xf32>
    %13 = arith.mulf %11, %12 : vector<3x512xf32>
    %14 = vector.extract_strided_slice %10 {offsets = [3, 0], sizes = [3, 512], strides = [1, 1]} : vector<12x512xf32> to vector<3x512xf32>
    %15 = vector.broadcast %7 : vector<1x512xf32> to vector<3x512xf32>
    %16 = arith.mulf %14, %15 : vector<3x512xf32>
    %17 = arith.addf %13, %16 : vector<3x512xf32>
    %18 = vector.extract_strided_slice %10 {offsets = [6, 0], sizes = [3, 512], strides = [1, 1]} : vector<12x512xf32> to vector<3x512xf32>
    %19 = vector.broadcast %9 : vector<1x512xf32> to vector<3x512xf32>
    %20 = arith.mulf %18, %19 : vector<3x512xf32>
    %21 = arith.addf %17, %20 : vector<3x512xf32>
    %22 = vector.extract_strided_slice %10 {offsets = [9, 0], sizes = [3, 512], strides = [1, 1]} : vector<12x512xf32> to vector<3x512xf32>
    %23 = arith.addf %21, %22 : vector<3x512xf32>
    %c0_6 = arith.constant 0 : index
    %c0_7 = arith.constant 0 : index
    %c0_8 = arith.constant 0 : index
    %24 = vector.load %arg4[%c0_6, %c0_7, %c0_8] : memref<2x3x512xf32, #tpu.memory_space<vmem>>, vector<1x3x512xf32>
    %25 = vector.shape_cast %24 : vector<1x3x512xf32> to vector<3x512xf32>
    %26 = vector.shape_cast %23 : vector<3x512xf32> to vector<1x3x512xf32>
    tpu.vector_store %arg4[%c0_6, %c0_7, %c0_8], %26 {strides = array<i32>} : memref<2x3x512xf32, #tpu.memory_space<vmem>>, vector<1x3x512xf32>,
    %27 = vector.extract_strided_slice %3 {offsets = [1, 0, 0], sizes = [1, 1, 512], strides = [1, 1, 1]} : vector<2x3x512xf32> to vector<1x1x512xf32>
    %28 = vector.shape_cast %27 : vector<1x1x512xf32> to vector<1x512xf32>
    %29 = vector.extract_strided_slice %3 {offsets = [1, 1, 0], sizes = [1, 1, 512], strides = [1, 1, 1]} : vector<2x3x512xf32> to vector<1x1x512xf32>
    %30 = vector.shape_cast %29 : vector<1x1x512xf32> to vector<1x512xf32>
    %31 = vector.extract_strided_slice %3 {offsets = [1, 2, 0], sizes = [1, 1, 512], strides = [1, 1, 1]} : vector<2x3x512xf32> to vector<1x1x512xf32>
    %32 = vector.shape_cast %31 : vector<1x1x512xf32> to vector<1x512xf32>
    %33 = vector.extract_strided_slice %2 {offsets = [12, 0], sizes = [12, 512], strides = [1, 1]} : vector<24x512xf32> to vector<12x512xf32>
    %34 = vector.extract_strided_slice %33 {offsets = [0, 0], sizes = [3, 512], strides = [1, 1]} : vector<12x512xf32> to vector<3x512xf32>
    %35 = vector.broadcast %28 : vector<1x512xf32> to vector<3x512xf32>
    %36 = arith.mulf %34, %35 : vector<3x512xf32>
    %37 = vector.extract_strided_slice %33 {offsets = [3, 0], sizes = [3, 512], strides = [1, 1]} : vector<12x512xf32> to vector<3x512xf32>
    %38 = vector.broadcast %30 : vector<1x512xf32> to vector<3x512xf32>
    %39 = arith.mulf %37, %38 : vector<3x512xf32>
    %40 = arith.addf %36, %39 : vector<3x512xf32>
    %41 = vector.extract_strided_slice %33 {offsets = [6, 0], sizes = [3, 512], strides = [1, 1]} : vector<12x512xf32> to vector<3x512xf32>
    %42 = vector.broadcast %32 : vector<1x512xf32> to vector<3x512xf32>
    %43 = arith.mulf %41, %42 : vector<3x512xf32>
    %44 = arith.addf %40, %43 : vector<3x512xf32>
    %45 = vector.extract_strided_slice %33 {offsets = [9, 0], sizes = [3, 512], strides = [1, 1]} : vector<12x512xf32> to vector<3x512xf32>
    %46 = arith.addf %44, %45 : vector<3x512xf32>
    %c1 = arith.constant 1 : index
    %c0_9 = arith.constant 0 : index
    %c0_10 = arith.constant 0 : index
    %47 = vector.load %arg4[%c1, %c0_9, %c0_10] : memref<2x3x512xf32, #tpu.memory_space<vmem>>, vector<1x3x512xf32>
    %48 = vector.shape_cast %47 : vector<1x3x512xf32> to vector<3x512xf32>
    %49 = vector.shape_cast %46 : vector<3x512xf32> to vector<1x3x512xf32>
    tpu.vector_store %arg4[%c1, %c0_9, %c0_10], %49 {strides = array<i32>} : memref<2x3x512xf32, #tpu.memory_space<vmem>>, vector<1x3x512xf32>,
    return
  }
  func.func @transform_0(%arg0: i32) -> (i32, i32) {
    %c0_i32 = arith.constant 0 : i32
    %c0_i32_0 = arith.constant 0 : i32
    %c0_i32_1 = arith.constant 0 : i32
    return %c0_i32, %c0_i32_0 : i32, i32
  }
  func.func @transform_1(%arg0: i32) -> (i32, i32) {
    %c0_i32 = arith.constant 0 : i32
    %c0_i32_0 = arith.constant 0 : i32
    return %c0_i32, %arg0 : i32, i32
  }
  func.func @transform_2(%arg0: i32) -> (i32, i32, i32) {
    %c0_i32 = arith.constant 0 : i32
    %c0_i32_0 = arith.constant 0 : i32
    %c0_i32_1 = arith.constant 0 : i32
    return %c0_i32, %c0_i32_0, %arg0 : i32, i32, i32
  }
  func.func @transform_3(%arg0: i32) -> (i32, i32, i32) {
    %c0_i32 = arith.constant 0 : i32
    %c0_i32_0 = arith.constant 0 : i32
    %c0_i32_1 = arith.constant 0 : i32
    return %c0_i32, %c0_i32_0, %arg0 : i32, i32, i32
  }
}

</mosaic_0001>

<llo_original>
// kernel: smpl_layer_forward.2
$region0: #{smpl_layer_forward.2}
  #allocation0 [shape = 'u32[]', space=smem, size = 0x4, offset = 0x4, fixed_abs, tag = 'smem constant byte address 0x4 - core index']
  #allocation1 [shape = 'u32[72,128]{1,0:T(1,128)}', space=vmem, size = 0x9000, scoped, tag = 'internal scratch']
  %s0 = inlined_call_operand.vmem [shape: f32[2,217], index: 0, kind: input, shape index: {}]
  %s1 = inlined_call_operand.hbm [shape: f32[1,3072], index: 1, kind: input, shape index: {}]
  %s2 = inlined_call_operand.hbm [shape: bf16[217,3072], index: 2, kind: input, shape index: {}]
  %s3 = inlined_call_operand.vmem [shape: f32[2,3072], index: 3, kind: output, shape index: {}]
  %s4 = sld [smem:[#allocation0]]
  $region53: #{smpl_layer_forward.2} parent=0
    _
  %s6 = ssub.s32 1, %s4
  %s7 = scalar_select 0, %s6, %s4
  $region1: #{smpl_layer_forward.2} parent=0
    #allocation2 [shape = 'u8[6144]{0}', space=vmem, size = 0x1800, scoped, tag = 'input window, operand 1']
    #allocation3 [shape = 's32[2]{0}', space=sflag, size = 0x8, scoped, tag = 'scoped memory for smpl_layer_forward.2']
    #allocation4 [shape = 'u8[688128]{0}', space=vmem, size = 0xa8000, scoped, tag = 'input window, operand 2']
    #allocation5 [shape = 's32[2]{0}', space=sflag, size = 0x8, scoped, tag = 'scoped memory for smpl_layer_forward.2']
    %8 = vsyncpa [#allocation3], 0
    %s9 = scalar_lea.sflag [#allocation3], 1
    %10 = vsyncpa %s9, 0
    %11 = vsyncpa [#allocation5], 0
    %s12 = scalar_lea.sflag [#allocation5], 1
    %13 = vsyncpa %s12, 0
    loop: start=0, step=1, limit=6
    $region2: #{smpl_layer_forward.2} parent=1 // loop_pre_header
      _
    $region3: #{smpl_layer_forward.2} parent=1 // loop_header
      %s15 = sphi 0, %s19
      %p16 = scmp.ge.s32.totalorder %s15, 6
      %s23 = sphi 0, %s23
      %s25 = sphi 0, %s23
      %s26 = sphi 0, %s25
      %s40 = sphi 0, %s26
      %s46 = sphi 0, %s48
      %s49 = sphi 0, %s46
      %s50 = sphi 0, %s49
      %s66 = sphi 0, %s50
      %s72 = sphi 0, %s74
      %s75 = sphi 0, %s72
      %s76 = sphi 0, %s75
      %s92 = sphi 0, %s76
      %s98 = sphi 0, %s100
      %s101 = sphi 0, %s98
      %s102 = sphi 0, %s101
      %s118 = sphi 0, %s102
    $region4: #{smpl_layer_forward.2} parent=1 // loop_header_branch
      %18 = sbr.rel (%p16) target = $region8
    $region5: #{smpl_layer_forward.2} parent=1 // loop_body
      %s20 = ssub.s32 %s15, 1
      %s21 = ssub.s32 %s15, 2
      %s22 = sadd.s32 %s15, 1
      %s24 = sadd.s32 %s23, 1
      %p27 = scmp.eq.s32.totalorder %s15, 3
      %p28 = scmp.ne.s32.totalorder %s23, %s25
      %p29 = scmp.eq.s32.totalorder %s15, 0
      %p30 = por %p28, %p29
      %p31 = scmp.ne.s32.totalorder %s23, %s25
      %p32 = scmp.eq.s32.totalorder %s20, 3
      %p33 = por %p31, %p32
      %p34 = scmp.ne.s32.totalorder %s25, %s26
      %p35 = scmp.eq.s32.totalorder %s20, 0
      %p36 = por %p34, %p35
      %p37 = scmp.ne.s32.totalorder %s25, %s26
      %p38 = scmp.eq.s32.totalorder %s21, 3
      %p39 = por %p37, %p38
      %p41 = scmp.ne.s32.totalorder %s26, %s40
      %p42 = scmp.eq.s32.totalorder %s21, 0
      %p43 = por %p41, %p42
      %s44 = ssub.s32 %s15, %s22
      %p45 = scmp.eq.s32.totalorder %s44, 0
      %s47 = sadd.s32 %s46, 1
      %s48 = scalar_select %p45, %s46, %s47
      %p51 = pneg %p45
      %p52 = scmp.eq.s32.totalorder %s15, 3
      %p53 = por %p51, %p52
      %p54 = scmp.ne.s32.totalorder %s46, %s49
      %p55 = scmp.eq.s32.totalorder %s15, 0
      %p56 = por %p54, %p55
      %p57 = scmp.ne.s32.totalorder %s46, %s49
      %p58 = scmp.eq.s32.totalorder %s20, 3
      %p59 = por %p57, %p58
      %p60 = scmp.ne.s32.totalorder %s49, %s50
      %p61 = scmp.eq.s32.totalorder %s20, 0
      %p62 = por %p60, %p61
      %p63 = scmp.ne.s32.totalorder %s49, %s50
      %p64 = scmp.eq.s32.totalorder %s21, 3
      %p65 = por %p63, %p64
      %p67 = scmp.ne.s32.totalorder %s50, %s66
      %p68 = scmp.eq.s32.totalorder %s21, 0
      %p69 = por %p67, %p68
      %s70 = ssub.s32 %s15, %s22
      %p71 = scmp.eq.s32.totalorder %s70, 0
      %s73 = sadd.s32 %s72, 1
      %s74 = scalar_select %p71, %s72, %s73
      %p77 = pneg %p71
      %p78 = scmp.eq.s32.totalorder %s15, 3
      %p79 = por %p77, %p78
      %p80 = scmp.ne.s32.totalorder %s72, %s75
      %p81 = scmp.eq.s32.totalorder %s15, 0
      %p82 = por %p80, %p81
      %p83 = scmp.ne.s32.totalorder %s72, %s75
      %p84 = scmp.eq.s32.totalorder %s20, 3
      %p85 = por %p83, %p84
      %p86 = scmp.ne.s32.totalorder %s75, %s76
      %p87 = scmp.eq.s32.totalorder %s20, 0
      %p88 = por %p86, %p87
      %p89 = scmp.ne.s32.totalorder %s75, %s76
      %p90 = scmp.eq.s32.totalorder %s21, 3
      %p91 = por %p89, %p90
      %p93 = scmp.ne.s32.totalorder %s76, %s92
      %p94 = scmp.eq.s32.totalorder %s21, 0
      %p95 = por %p93, %p94
      %s96 = ssub.s32 %s15, %s22
      %p97 = scmp.eq.s32.totalorder %s96, 0
      %s99 = sadd.s32 %s98, 1
      %s100 = scalar_select %p97, %s98, %s99
      %p103 = pneg %p97
      %p104 = scmp.eq.s32.totalorder %s15, 3
      %p105 = por %p103, %p104
      %p106 = scmp.ne.s32.totalorder %s98, %s101
      %p107 = scmp.eq.s32.totalorder %s15, 0
      %p108 = por %p106, %p107
      %p109 = scmp.ne.s32.totalorder %s98, %s101
      %p110 = scmp.eq.s32.totalorder %s20, 3
      %p111 = por %p109, %p110
      %p112 = scmp.ne.s32.totalorder %s101, %s102
      %p113 = scmp.eq.s32.totalorder %s20, 0
      %p114 = por %p112, %p113
      %p115 = scmp.ne.s32.totalorder %s101, %s102
      %p116 = scmp.eq.s32.totalorder %s21, 3
      %p117 = por %p115, %p116
      %p119 = scmp.ne.s32.totalorder %s102, %s118
      %p120 = scmp.eq.s32.totalorder %s21, 0
      %p121 = por %p119, %p120
      %p122 = scmp.le.s32.totalorder 1, %s15
      %p123 = scmp.lt.s32.totalorder %s15, 5
      %p124 = pnand %p122, %p123
      %p125 = pneg %p124
      // Predicated region
      $region9: #{smpl_layer_forward.2} parent=5 // pred_check
        _
      $region10: #{smpl_layer_forward.2} parent=5 // pred_check_branch
        %127 = sbr.rel (%p124) target = $region12
      $region11: #{smpl_layer_forward.2} parent=5 // pred_region
        %s128 = ssub.s32 %s15, 1
        // Predicated region
        $region13: #{smpl_layer_forward.2} parent=11 // pred_check
          %p129 = pneg %p36
        $region14: #{smpl_layer_forward.2} parent=11 // pred_check_branch
          %131 = sbr.rel (%p129) target = $region16
        $region15: #{smpl_layer_forward.2} parent=11 // pred_region
          _
        $region16: #{smpl_layer_forward.2} parent=11 // pred_fallthru
          _
      $region12: #{smpl_layer_forward.2} parent=5 // pred_fallthru
        _
      %p132 = scmp.lt.s32.totalorder %s15, 4
      // Predicated region
      $region17: #{smpl_layer_forward.2} parent=5 // pred_check
        %p133 = pneg %p132
      $region18: #{smpl_layer_forward.2} parent=5 // pred_check_branch
        %135 = sbr.rel (%p133) target = $region20
      $region19: #{smpl_layer_forward.2} parent=5 // pred_region
        // Predicated region
        $region21: #{smpl_layer_forward.2} parent=19 // pred_check
          %p136 = pneg %p56
        $region22: #{smpl_layer_forward.2} parent=19 // pred_check_branch
          %138 = sbr.rel (%p136) target = $region24
        $region23: #{smpl_layer_forward.2} parent=19 // pred_region
          %s139 = sand.u32 %s46, 1
          %s140 = scalar_lea.sflag [#allocation3], %s139
          %s141 = sand.u32 %s46, 1
          %s142 = smul.addr %s141, 6
          %s143 = scalar_lea.vmem [#allocation2], %s142
          %s144 = smul.u32 6, %s15
          %146 = vsyncadd %s140, 0
          %s147 = scalar_lea.hbm %s1, %s144
          %s149 = sshll.u32 %s147, 4
          %s150 = int_to_ptr.hbm [resolvable:$true] %s149
          %s151 = sshll.u32 %s143, 4
          %s152 = int_to_ptr.vmem [resolvable:$true] %s151
          %154 = dma.hbm_to_vmem [thread:$0]  %s150, 96, %s152, %s140
        $region24: #{smpl_layer_forward.2} parent=19 // pred_fallthru
          _
        // Predicated region
        $region25: #{smpl_layer_forward.2} parent=19 // pred_check
          %p155 = pneg %p82
        $region26: #{smpl_layer_forward.2} parent=19 // pred_check_branch
          %157 = sbr.rel (%p155) target = $region28
        $region27: #{smpl_layer_forward.2} parent=19 // pred_region
          %s158 = sand.u32 %s72, 1
          %s159 = scalar_lea.sflag [#allocation5], %s158
          %s160 = sand.u32 %s72, 1
          %s161 = smul.addr %s160, 672
          %s162 = scalar_lea.vmem [#allocation4], %s161
          %s163 = smul.u32 6, %s15
          %165 = vsyncadd %s159, 0
          %s166 = smul.addr %s163, 4
          %s167 = scalar_lea.hbm %s2, %s166
          %s168 = sshll.u32 %s167, 4
          %s169 = int_to_ptr.hbm [resolvable:$true] %s168
          %s170 = sshll.u32 %s162, 4
          %s171 = int_to_ptr.vmem [resolvable:$true] %s170
          %176 = dma.hbm_to_vmem [thread:$0]  %s169, 10752, %s171, %s159, 1536, 384, 24
        $region28: #{smpl_layer_forward.2} parent=19 // pred_fallthru
          _
      $region20: #{smpl_layer_forward.2} parent=5 // pred_fallthru
        _
      %p177 = scmp.le.s32.totalorder 1, %s15
      %p178 = scmp.lt.s32.totalorder %s15, 5
      %p179 = pnand %p177, %p178
      %p180 = pneg %p179
      // Predicated region
      $region29: #{smpl_layer_forward.2} parent=5 // pred_check
        _
      $region30: #{smpl_layer_forward.2} parent=5 // pred_check_branch
        %182 = sbr.rel (%p179) target = $region32
      $region31: #{smpl_layer_forward.2} parent=5 // pred_region
        %s183 = ssub.s32 %s15, 1
        %s184 = sand.u32 %s49, 1
        %s185 = scalar_lea.sflag [#allocation3], %s184
        %s186 = sand.u32 %s49, 1
        %s187 = smul.addr %s186, 6
        %s188 = scalar_lea.vmem [#allocation2], %s187
        // Predicated region
        $region33: #{smpl_layer_forward.2} parent=31 // pred_check
          %p189 = pneg %p62
        $region34: #{smpl_layer_forward.2} parent=31 // pred_check_branch
          %191 = sbr.rel (%p189) target = $region36
        $region35: #{smpl_layer_forward.2} parent=31 // pred_region
          %193 = dma.done %s185, 96
        $region36: #{smpl_layer_forward.2} parent=31 // pred_fallthru
          _
        %s194 = sand.u32 %s75, 1
        %s195 = scalar_lea.sflag [#allocation5], %s194
        %s196 = sand.u32 %s75, 1
        %s197 = smul.addr %s196, 672
        %s198 = scalar_lea.vmem [#allocation4], %s197
        // Predicated region
        $region37: #{smpl_layer_forward.2} parent=31 // pred_check
          %p199 = pneg %p88
        $region38: #{smpl_layer_forward.2} parent=31 // pred_check_branch
          %201 = sbr.rel (%p199) target = $region40
        $region39: #{smpl_layer_forward.2} parent=31 // pred_region
          %203 = dma.done %s195, 10752
        $region40: #{smpl_layer_forward.2} parent=31 // pred_fallthru
          _
        %p204 = pneg %p36
        %p205 = pneg %p33
        %s206 = sand.u32 %s49, 1
        %s207 = scalar_lea.sflag [#allocation3], %s206
        %s208 = sand.u32 %s49, 1
        %s209 = smul.addr %s208, 6
        %s210 = scalar_lea.vmem [#allocation2], %s209
        %p211 = pneg %p62
        %p212 = pneg %p59
        %s213 = sand.u32 %s75, 1
        %s214 = scalar_lea.sflag [#allocation5], %s213
        %s215 = sand.u32 %s75, 1
        %s216 = smul.addr %s215, 672
        %s217 = scalar_lea.vmem [#allocation4], %s216
        %p218 = pneg %p88
        %p219 = pneg %p85
        %p220 = pneg %p114
        %p221 = pneg %p111
        %s222 = smul.u32 6, %s20
        %p223 = scmp.lt.s32.totalorder %s222, 23
        %s224 = scalar_select %p223, %s222, 23
        %s225 = smul.addr %s224, 2
        %s226 = scalar_lea.vmem %s3, %s225
        %s227 = smul.u32 6, %s20
        %s228 = smul.u32 6, %s20
        %s229 = smul.u32 6, %s20
        %p230 = scmp.lt.s32.totalorder %s229, 23
        %s231 = scalar_select %p230, %s229, 23
        %s232 = smul.addr %s231, 2
        %s233 = scalar_lea.vmem %s3, %s232
        %s234 = smul.u32 6, %s20
        %v236 = vld [vmem:[%s198] sm:$0xff]
        %v237 = vld [vmem:[%s198 + $0x8] sm:$0xff]
        %v238 = vld [vmem:[%s198 + $0x10] sm:$0xff]
        %v239 = vld [vmem:[%s198 + $0x18] sm:$0xff]
        %v240 = vld [vmem:[%s198 + $0x20] sm:$0xff]
        %v241 = vld [vmem:[%s198 + $0x28] sm:$0xff]
        %v242 = vld [vmem:[%s198 + $0x30] sm:$0xff]
        %v243 = vld [vmem:[%s198 + $0x38] sm:$0xff]
        %v244 = vld [vmem:[%s198 + $0x40] sm:$0xff]
        %v245 = vld [vmem:[%s198 + $0x48] sm:$0xff]
        %v246 = vld [vmem:[%s198 + $0x50] sm:$0xff]
        %v247 = vld [vmem:[%s198 + $0x58] sm:$0xff]
        %v248 = vld [vmem:[%s198 + $0x60] sm:$0xff]
        %v249 = vld [vmem:[%s198 + $0x68] sm:$0xff]
        %v250 = vld [vmem:[%s198 + $0x70] sm:$0xff]
        %v251 = vld [vmem:[%s198 + $0x78] sm:$0xff]
        %v252 = vld [vmem:[%s198 + $0x80] sm:$0xff]
        %v253 = vld [vmem:[%s198 + $0x88] sm:$0xff]
        %v254 = vld [vmem:[%s198 + $0x90] sm:$0xff]
        %v255 = vld [vmem:[%s198 + $0x98] sm:$0xff]
        %v256 = vld [vmem:[%s198 + $0xa0] sm:$0xff]
        %v257 = vld [vmem:[%s198 + $0xa8] sm:$0xff]
        %v258 = vld [vmem:[%s198 + $0xb0] sm:$0xff]
        %v259 = vld [vmem:[%s198 + $0xb8] sm:$0xff]
        %v260 = vld [vmem:[%s198 + $0xc0] sm:$0xff]
        %v261 = vld [vmem:[%s198 + $0xc8] sm:$0xff]
        %v262 = vld [vmem:[%s198 + $0xd0] sm:$0xff]
        %v263 = vld [vmem:[%s198 + $0xd8] sm:$0xff]
        %v264 = vld [vmem:[%s198 + $0xe0] sm:$0xff]
        %v265 = vld [vmem:[%s198 + $0xe8] sm:$0xff]
        %v266 = vld [vmem:[%s198 + $0xf0] sm:$0xff]
        %v267 = vld [vmem:[%s198 + $0xf8] sm:$0xff]
        %v268 = vld [vmem:[%s198 + $0x100] sm:$0xff]
        %v269 = vld [vmem:[%s198 + $0x108] sm:$0xff]
        %v270 = vld [vmem:[%s198 + $0x110] sm:$0xff]
        %v271 = vld [vmem:[%s198 + $0x118] sm:$0xff]
        %v272 = vld [vmem:[%s198 + $0x120] sm:$0xff]
        %v273 = vld [vmem:[%s198 + $0x128] sm:$0xff]
        %v274 = vld [vmem:[%s198 + $0x130] sm:$0xff]
        %v275 = vld [vmem:[%s198 + $0x138] sm:$0xff]
        %v276 = vld [vmem:[%s198 + $0x140] sm:$0xff]
        %v277 = vld [vmem:[%s198 + $0x148] sm:$0xff]
        %v278 = vld [vmem:[%s198 + $0x150] sm:$0xff]
        %v279 = vld [vmem:[%s198 + $0x158] sm:$0xff]
        %v280 = vld [vmem:[%s198 + $0x160] sm:$0xff]
        %v281 = vld [vmem:[%s198 + $0x168] sm:$0xff]
        %v282 = vld [vmem:[%s198 + $0x170] sm:$0xff]
        %v283 = vld [vmem:[%s198 + $0x178] sm:$0xff]
        %v284 = vld [vmem:[%s198 + $0x180] sm:$0xff]
        %v285 = vld [vmem:[%s198 + $0x188] sm:$0xff]
        %v286 = vld [vmem:[%s198 + $0x190] sm:$0xff]
        %v287 = vld [vmem:[%s198 + $0x198] sm:$0xff]
        %v288 = vld [vmem:[%s198 + $0x1a0] sm:$0xff]
        %v289 = vld [vmem:[%s198 + $0x1a8] sm:$0xff]
        %v290 = vld [vmem:[%s198 + $0x1b0] sm:$0xff]
        %v291 = vld [vmem:[%s198 + $0x1b8] sm:$0xff]
        %v292 = vld [vmem:[%s198 + $0x1c0] sm:$0xff]
        %v293 = vld [vmem:[%s198 + $0x1c8] sm:$0xff]
        %v294 = vld [vmem:[%s198 + $0x1d0] sm:$0xff]
        %v295 = vld [vmem:[%s198 + $0x1d8] sm:$0xff]
        %v296 = vld [vmem:[%s198 + $0x1e0] sm:$0xff]
        %v297 = vld [vmem:[%s198 + $0x1e8] sm:$0xff]
        %v298 = vld [vmem:[%s198 + $0x1f0] sm:$0xff]
        %v299 = vld [vmem:[%s198 + $0x1f8] sm:$0xff]
        %v300 = vld [vmem:[%s198 + $0x200] sm:$0xff]
        %v301 = vld [vmem:[%s198 + $0x208] sm:$0xff]
        %v302 = vld [vmem:[%s198 + $0x210] sm:$0xff]
        %v303 = vld [vmem:[%s198 + $0x218] sm:$0xff]
        %v304 = vld [vmem:[%s198 + $0x220] sm:$0xff]
        %v305 = vld [vmem:[%s198 + $0x228] sm:$0xff]
        %v306 = vld [vmem:[%s198 + $0x230] sm:$0xff]
        %v307 = vld [vmem:[%s198 + $0x238] sm:$0xff]
        %v308 = vld [vmem:[%s198 + $0x240] sm:$0xff]
        %v309 = vld [vmem:[%s198 + $0x248] sm:$0xff]
        %v310 = vld [vmem:[%s198 + $0x250] sm:$0xff]
        %v311 = vld [vmem:[%s198 + $0x258] sm:$0xff]
        %v312 = vld [vmem:[%s198 + $0x260] sm:$0xff]
        %v313 = vld [vmem:[%s198 + $0x268] sm:$0xff]
        %v314 = vld [vmem:[%s198 + $0x270] sm:$0xff]
        %v315 = vld [vmem:[%s198 + $0x278] sm:$0xff]
        %v316 = vld [vmem:[%s198 + $0x280] sm:$0xff]
        %v317 = vld [vmem:[%s198 + $0x288] sm:$0x11]
        %v318 = vld [vmem:[%s198 + $0x290] sm:$0x11]
        %v319 = vld [vmem:[%s198 + $0x298] sm:$0x11]
        %v320 = vld [vmem:[%s0] sm:$0xf]
        %322 = vst [vmem:[#allocation1] ss:$4 sm:$0xff] %v320
        %v323 = vld.sshfl [vmem:[#allocation1] sm:$0xff pattern:$0x73625140]
        %v324 = vld.sshfl [vmem:[#allocation1 + $0x8] sm:$0xff pattern:$0x73625140]
        %v327 = vpack.c.bf16 %v323, %v323
        %v328 = vpack.c.bf16 %v324, %v324
        %v329 = vld [vmem:[%s188] sm:$0x3f]
        %v414 = vunpack.c.l.b16 %v236
        %v415 = vunpack.c.h.b16 %v236
        %v416 = vunpack.c.l.b16 %v237
        %v417 = vunpack.c.h.b16 %v237
        %v418 = vunpack.c.l.b16 %v238
        %v419 = vunpack.c.h.b16 %v238
        %v420 = vunpack.c.l.b16 %v239
        %v421 = vunpack.c.h.b16 %v239
        %v422 = vunpack.c.l.b16 %v240
        %v423 = vunpack.c.h.b16 %v240
        %v424 = vunpack.c.l.b16 %v241
        %v425 = vunpack.c.h.b16 %v241
        %v426 = vunpack.c.l.b16 %v242
        %v427 = vunpack.c.h.b16 %v242
        %v428 = vunpack.c.l.b16 %v243
        %v429 = vunpack.c.h.b16 %v243
        %v430 = vunpack.c.l.b16 %v244
        %v431 = vunpack.c.h.b16 %v244
        %v432 = vunpack.c.l.b16 %v245
        %v433 = vunpack.c.h.b16 %v245
        %v434 = vunpack.c.l.b16 %v246
        %v435 = vunpack.c.h.b16 %v246
        %v436 = vunpack.c.l.b16 %v247
        %v437 = vunpack.c.h.b16 %v247
        %v438 = vunpack.c.l.b16 %v248
        %v439 = vunpack.c.h.b16 %v248
        %v440 = vunpack.c.l.b16 %v249
        %v441 = vunpack.c.h.b16 %v249
        %v442 = vunpack.c.l.b16 %v250
        %v443 = vunpack.c.h.b16 %v250
        %v444 = vunpack.c.l.b16 %v251
        %v445 = vunpack.c.h.b16 %v251
        %v446 = vunpack.c.l.b16 %v252
        %v447 = vunpack.c.h.b16 %v252
        %v448 = vunpack.c.l.b16 %v253
        %v449 = vunpack.c.h.b16 %v253
        %v450 = vunpack.c.l.b16 %v254
        %v451 = vunpack.c.h.b16 %v254
        %v452 = vunpack.c.l.b16 %v255
        %v453 = vunpack.c.h.b16 %v255
        %v454 = vunpack.c.l.b16 %v256
        %v455 = vunpack.c.h.b16 %v256
        %v456 = vunpack.c.l.b16 %v257
        %v457 = vunpack.c.h.b16 %v257
        %v458 = vunpack.c.l.b16 %v258
        %v459 = vunpack.c.h.b16 %v258
        %v460 = vunpack.c.l.b16 %v259
        %v461 = vunpack.c.h.b16 %v259
        %v462 = vunpack.c.l.b16 %v260
        %v463 = vunpack.c.h.b16 %v260
        %v464 = vunpack.c.l.b16 %v261
        %v465 = vunpack.c.h.b16 %v261
        %v466 = vunpack.c.l.b16 %v262
        %v467 = vunpack.c.h.b16 %v262
        %v468 = vunpack.c.l.b16 %v263
        %v469 = vunpack.c.h.b16 %v263
        %v470 = vunpack.c.l.b16 %v264
        %v471 = vunpack.c.h.b16 %v264
        %v472 = vunpack.c.l.b16 %v265
        %v473 = vunpack.c.h.b16 %v265
        %v474 = vunpack.c.l.b16 %v266
        %v475 = vunpack.c.h.b16 %v266
        %v476 = vunpack.c.l.b16 %v267
        %v477 = vunpack.c.h.b16 %v267
        %v478 = vunpack.c.l.b16 %v268
        %v479 = vunpack.c.h.b16 %v268
        %v480 = vunpack.c.l.b16 %v269
        %v481 = vunpack.c.h.b16 %v269
        %v482 = vunpack.c.l.b16 %v270
        %v483 = vunpack.c.h.b16 %v270
        %v484 = vunpack.c.l.b16 %v271
        %v485 = vunpack.c.h.b16 %v271
        %v486 = vunpack.c.l.b16 %v272
        %v487 = vunpack.c.h.b16 %v272
        %v488 = vunpack.c.l.b16 %v273
        %v489 = vunpack.c.h.b16 %v273
        %v490 = vunpack.c.l.b16 %v274
        %v491 = vunpack.c.h.b16 %v274
        %v492 = vunpack.c.l.b16 %v275
        %v493 = vunpack.c.h.b16 %v275
        %v494 = vunpack.c.l.b16 %v276
        %v495 = vunpack.c.h.b16 %v276
        %v496 = vunpack.c.l.b16 %v277
        %v497 = vunpack.c.h.b16 %v277
        %v498 = vunpack.c.l.b16 %v278
        %v499 = vunpack.c.h.b16 %v278
        %v500 = vunpack.c.l.b16 %v279
        %v501 = vunpack.c.h.b16 %v279
        %v502 = vunpack.c.l.b16 %v280
        %v503 = vunpack.c.h.b16 %v280
        %v504 = vunpack.c.l.b16 %v281
        %v505 = vunpack.c.h.b16 %v281
        %v506 = vunpack.c.l.b16 %v282
        %v507 = vunpack.c.h.b16 %v282
        %v508 = vunpack.c.l.b16 %v283
        %v509 = vunpack.c.h.b16 %v283
        %v510 = vunpack.c.l.b16 %v284
        %v511 = vunpack.c.h.b16 %v284
        %v512 = vunpack.c.l.b16 %v285
        %v513 = vunpack.c.h.b16 %v285
        %v514 = vunpack.c.l.b16 %v286
        %v515 = vunpack.c.h.b16 %v286
        %v516 = vunpack.c.l.b16 %v287
        %v517 = vunpack.c.h.b16 %v287
        %v518 = vunpack.c.l.b16 %v288
        %v519 = vunpack.c.h.b16 %v288
        %v520 = vunpack.c.l.b16 %v289
        %v521 = vunpack.c.h.b16 %v289
        %v522 = vunpack.c.l.b16 %v290
        %v523 = vunpack.c.h.b16 %v290
        %v524 = vunpack.c.l.b16 %v291
        %v525 = vunpack.c.h.b16 %v291
        %v526 = vunpack.c.l.b16 %v292
        %v527 = vunpack.c.h.b16 %v292
        %v528 = vunpack.c.l.b16 %v293
        %v529 = vunpack.c.h.b16 %v293
        %v530 = vunpack.c.l.b16 %v294
        %v531 = vunpack.c.h.b16 %v294
        %v532 = vunpack.c.l.b16 %v295
        %v533 = vunpack.c.h.b16 %v295
        %v534 = vunpack.c.l.b16 %v296
        %v535 = vunpack.c.h.b16 %v296
        %v536 = vunpack.c.l.b16 %v297
        %v537 = vunpack.c.h.b16 %v297
        %v538 = vunpack.c.l.b16 %v298
        %v539 = vunpack.c.h.b16 %v298
        %v540 = vunpack.c.l.b16 %v299
        %v541 = vunpack.c.h.b16 %v299
        %v542 = vunpack.c.l.b16 %v300
        %v543 = vunpack.c.h.b16 %v300
        %v544 = vunpack.c.l.b16 %v301
        %v545 = vunpack.c.h.b16 %v301
        %v546 = vunpack.c.l.b16 %v302
        %v547 = vunpack.c.h.b16 %v302
        %v548 = vunpack.c.l.b16 %v303
        %v549 = vunpack.c.h.b16 %v303
        %v550 = vunpack.c.l.b16 %v304
        %v551 = vunpack.c.h.b16 %v304
        %v552 = vunpack.c.l.b16 %v305
        %v553 = vunpack.c.h.b16 %v305
        %v554 = vunpack.c.l.b16 %v306
        %v555 = vunpack.c.h.b16 %v306
        %v556 = vunpack.c.l.b16 %v307
        %v557 = vunpack.c.h.b16 %v307
        %v558 = vunpack.c.l.b16 %v308
        %v559 = vunpack.c.h.b16 %v308
        %v560 = vunpack.c.l.b16 %v309
        %v561 = vunpack.c.h.b16 %v309
        %v562 = vunpack.c.l.b16 %v310
        %v563 = vunpack.c.h.b16 %v310
        %v564 = vunpack.c.l.b16 %v311
        %v565 = vunpack.c.h.b16 %v311
        %v566 = vunpack.c.l.b16 %v312
        %v567 = vunpack.c.h.b16 %v312
        %v568 = vunpack.c.l.b16 %v313
        %v569 = vunpack.c.h.b16 %v313
        %v570 = vunpack.c.l.b16 %v314
        %v571 = vunpack.c.h.b16 %v314
        %v572 = vunpack.c.l.b16 %v315
        %v573 = vunpack.c.h.b16 %v315
        %v574 = vunpack.c.l.b16 %v316
        %v575 = vunpack.c.h.b16 %v316
        %v576 = vunpack.c.l.b16 %v317
        %v577 = vunpack.c.h.b16 %v317
        %v578 = vunpack.c.l.b16 %v318
        %v579 = vunpack.c.h.b16 %v318
        %v580 = vunpack.c.l.b16 %v319
        %v581 = vunpack.c.h.b16 %v319
        %v582 = vpack.c.b16 %v420, %v414
        %v583 = vpack.c.b16 %v421, %v415
        %v584 = vpack.c.b16 %v422, %v416
        %v585 = vpack.c.b16 %v423, %v417
        %v586 = vpack.c.b16 %v424, %v418
        %v587 = vpack.c.b16 %v425, %v419
        %v588 = vpack.c.b16 %v432, %v426
        %v589 = vpack.c.b16 %v433, %v427
        %v590 = vpack.c.b16 %v434, %v428
        %v591 = vpack.c.b16 %v435, %v429
        %v592 = vpack.c.b16 %v436, %v430
        %v593 = vpack.c.b16 %v437, %v431
        %v594 = vpack.c.b16 %v444, %v438
        %v595 = vpack.c.b16 %v445, %v439
        %v596 = vpack.c.b16 %v446, %v440
        %v597 = vpack.c.b16 %v447, %v441
        %v598 = vpack.c.b16 %v448, %v442
        %v599 = vpack.c.b16 %v449, %v443
        %v600 = vpack.c.b16 %v456, %v450
        %v601 = vpack.c.b16 %v457, %v451
        %v602 = vpack.c.b16 %v458, %v452
        %v603 = vpack.c.b16 %v459, %v453
        %v604 = vpack.c.b16 %v460, %v454
        %v605 = vpack.c.b16 %v461, %v455
        %v606 = vpack.c.b16 %v468, %v462
        %v607 = vpack.c.b16 %v469, %v463
        %v608 = vpack.c.b16 %v470, %v464
        %v609 = vpack.c.b16 %v471, %v465
        %v610 = vpack.c.b16 %v472, %v466
        %v611 = vpack.c.b16 %v473, %v467
        %v612 = vpack.c.b16 %v480, %v474
        %v613 = vpack.c.b16 %v481, %v475
        %v614 = vpack.c.b16 %v482, %v476
        %v615 = vpack.c.b16 %v483, %v477
        %v616 = vpack.c.b16 %v484, %v478
        %v617 = vpack.c.b16 %v485, %v479
        %v618 = vpack.c.b16 %v492, %v486
        %v619 = vpack.c.b16 %v493, %v487
        %v620 = vpack.c.b16 %v494, %v488
        %v621 = vpack.c.b16 %v495, %v489
        %v622 = vpack.c.b16 %v496, %v490
        %v623 = vpack.c.b16 %v497, %v491
        %v624 = vpack.c.b16 %v504, %v498
        %v625 = vpack.c.b16 %v505, %v499
        %v626 = vpack.c.b16 %v506, %v500
        %v627 = vpack.c.b16 %v507, %v501
        %v628 = vpack.c.b16 %v508, %v502
        %v629 = vpack.c.b16 %v509, %v503
        %v630 = vpack.c.b16 %v516, %v510
        %v631 = vpack.c.b16 %v517, %v511
        %v632 = vpack.c.b16 %v518, %v512
        %v633 = vpack.c.b16 %v519, %v513
        %v634 = vpack.c.b16 %v520, %v514
        %v635 = vpack.c.b16 %v521, %v515
        %v636 = vpack.c.b16 %v528, %v522
        %v637 = vpack.c.b16 %v529, %v523
        %v638 = vpack.c.b16 %v530, %v524
        %v639 = vpack.c.b16 %v531, %v525
        %v640 = vpack.c.b16 %v532, %v526
        %v641 = vpack.c.b16 %v533, %v527
        %v642 = vpack.c.b16 %v540, %v534
        %v643 = vpack.c.b16 %v541, %v535
        %v644 = vpack.c.b16 %v542, %v536
        %v645 = vpack.c.b16 %v543, %v537
        %v646 = vpack.c.b16 %v544, %v538
        %v647 = vpack.c.b16 %v545, %v539
        %v648 = vpack.c.b16 %v552, %v546
        %v649 = vpack.c.b16 %v553, %v547
        %v650 = vpack.c.b16 %v554, %v548
        %v651 = vpack.c.b16 %v555, %v549
        %v652 = vpack.c.b16 %v556, %v550
        %v653 = vpack.c.b16 %v557, %v551
        %v654 = vpack.c.b16 %v564, %v558
        %v655 = vpack.c.b16 %v565, %v559
        %v656 = vpack.c.b16 %v566, %v560
        %v657 = vpack.c.b16 %v567, %v561
        %v658 = vpack.c.b16 %v568, %v562
        %v659 = vpack.c.b16 %v569, %v563
        %v660 = vpack.c.b16 %v576, %v570
        %v661 = vpack.c.b16 %v577, %v571
        %v662 = vpack.c.b16 %v578, %v572
        %v663 = vpack.c.b16 %v579, %v573
        %v664 = vpack.c.b16 %v580, %v574
        %v665 = vpack.c.b16 %v581, %v575
        %vm744 = vcmask 728064
        %v746 = vsel %vm744, %v328, 0
        %vm748 = vcmask 1043456
        %vm749 = vcmask 1044480
        %v750 = vsel %vm748, 4294967295, 65535
        %v751 = vsel %vm749, %v750, 0
        %v753 = vand.u32 %v660, %v751
        %v756 = vand.u32 %v661, %v751
        %v759 = vand.u32 %v662, %v751
        %v762 = vand.u32 %v663, %v751
        %v765 = vand.u32 %v664, %v751
        %v768 = vand.u32 %v665, %v751
        %770 = vmatpush.bf16.msra.mxu0 %v624
        %771 = vmatpush.bf16.msra.mxu0 %v618
        %772 = vmatpush.bf16.msra.mxu0 %v612
        %773 = vmatpush.bf16.msra.mxu0 %v606
        %774 = vmatpush.bf16.msra.mxu0 %v600
        %775 = vmatpush.bf16.msra.mxu0 %v594
        %776 = vmatpush.bf16.msra.mxu0 %v588
        %777 = vmatpush.bf16.msra.mxu0 %v582
        %778 = vmatmul.bf16.gmra.mxu0 %v327
        %v779 = vpop.f32.mrf.mxu0
        %v780 = vadd.f32 0.0, %v779
        %v781 = vpop.f32.mrf.mxu0
        %782 = vdwg.mxu0
        %783 = vmatpush.bf16.msra.mxu0 0
        %784 = vmatpush.bf16.msra.mxu0 0
        %785 = vmatpush.bf16.msra.mxu0 %v753
        %786 = vmatpush.bf16.msra.mxu0 %v654
        %787 = vmatpush.bf16.msra.mxu0 %v648
        %788 = vmatpush.bf16.msra.mxu0 %v642
        %789 = vmatpush.bf16.msra.mxu0 %v636
        %790 = vmatpush.bf16.msra.mxu0 %v630
        %791 = vmatmul.bf16.gmra.mxu0 %v746
        %v792 = vpop.f32.mrf.mxu0
        %v793 = vadd.f32 %v780, %v792
        %v794 = vpop.f32.mrf.mxu0
        %795 = vdwg.mxu0
        %796 = vmatpush.bf16.msra.mxu0 %v625
        %797 = vmatpush.bf16.msra.mxu0 %v619
        %798 = vmatpush.bf16.msra.mxu0 %v613
        %799 = vmatpush.bf16.msra.mxu0 %v607
        %800 = vmatpush.bf16.msra.mxu0 %v601
        %801 = vmatpush.bf16.msra.mxu0 %v595
        %802 = vmatpush.bf16.msra.mxu0 %v589
        %803 = vmatpush.bf16.msra.mxu0 %v583
        %804 = vmatmul.bf16.gmra.mxu0 %v327
        %v805 = vpop.f32.mrf.mxu0
        %v806 = vadd.f32 0.0, %v805
        %v807 = vpop.f32.mrf.mxu0
        %808 = vdwg.mxu0
        %809 = vmatpush.bf16.msra.mxu0 0
        %810 = vmatpush.bf16.msra.mxu0 0
        %811 = vmatpush.bf16.msra.mxu0 %v756
        %812 = vmatpush.bf16.msra.mxu0 %v655
        %813 = vmatpush.bf16.msra.mxu0 %v649
        %814 = vmatpush.bf16.msra.mxu0 %v643
        %815 = vmatpush.bf16.msra.mxu0 %v637
        %816 = vmatpush.bf16.msra.mxu0 %v631
        %817 = vmatmul.bf16.gmra.mxu0 %v746
        %v818 = vpop.f32.mrf.mxu0
        %v819 = vadd.f32 %v806, %v818
        %v820 = vpop.f32.mrf.mxu0
        %821 = vdwg.mxu0
        %822 = vmatpush.bf16.msra.mxu0 %v626
        %823 = vmatpush.bf16.msra.mxu0 %v620
        %824 = vmatpush.bf16.msra.mxu0 %v614
        %825 = vmatpush.bf16.msra.mxu0 %v608
        %826 = vmatpush.bf16.msra.mxu0 %v602
        %827 = vmatpush.bf16.msra.mxu0 %v596
        %828 = vmatpush.bf16.msra.mxu0 %v590
        %829 = vmatpush.bf16.msra.mxu0 %v584
        %830 = vmatmul.bf16.gmra.mxu0 %v327
        %v831 = vpop.f32.mrf.mxu0
        %v832 = vadd.f32 0.0, %v831
        %v833 = vpop.f32.mrf.mxu0
        %834 = vdwg.mxu0
        %835 = vmatpush.bf16.msra.mxu0 0
        %836 = vmatpush.bf16.msra.mxu0 0
        %837 = vmatpush.bf16.msra.mxu0 %v759
        %838 = vmatpush.bf16.msra.mxu0 %v656
        %839 = vmatpush.bf16.msra.mxu0 %v650
        %840 = vmatpush.bf16.msra.mxu0 %v644
        %841 = vmatpush.bf16.msra.mxu0 %v638
        %842 = vmatpush.bf16.msra.mxu0 %v632
        %843 = vmatmul.bf16.gmra.mxu0 %v746
        %v844 = vpop.f32.mrf.mxu0
        %v845 = vadd.f32 %v832, %v844
        %v846 = vpop.f32.mrf.mxu0
        %847 = vdwg.mxu0
        %848 = vmatpush.bf16.msra.mxu0 %v627
        %849 = vmatpush.bf16.msra.mxu0 %v621
        %850 = vmatpush.bf16.msra.mxu0 %v615
        %851 = vmatpush.bf16.msra.mxu0 %v609
        %852 = vmatpush.bf16.msra.mxu0 %v603
        %853 = vmatpush.bf16.msra.mxu0 %v597
        %854 = vmatpush.bf16.msra.mxu0 %v591
        %855 = vmatpush.bf16.msra.mxu0 %v585
        %856 = vmatmul.bf16.gmra.mxu0 %v327
        %v857 = vpop.f32.mrf.mxu0
        %v858 = vadd.f32 0.0, %v857
        %v859 = vpop.f32.mrf.mxu0
        %860 = vdwg.mxu0
        %861 = vmatpush.bf16.msra.mxu0 0
        %862 = vmatpush.bf16.msra.mxu0 0
        %863 = vmatpush.bf16.msra.mxu0 %v762
        %864 = vmatpush.bf16.msra.mxu0 %v657
        %865 = vmatpush.bf16.msra.mxu0 %v651
        %866 = vmatpush.bf16.msra.mxu0 %v645
        %867 = vmatpush.bf16.msra.mxu0 %v639
        %868 = vmatpush.bf16.msra.mxu0 %v633
        %869 = vmatmul.bf16.gmra.mxu0 %v746
        %v870 = vpop.f32.mrf.mxu0
        %v871 = vadd.f32 %v858, %v870
        %v872 = vpop.f32.mrf.mxu0
        %873 = vdwg.mxu0
        %874 = vmatpush.bf16.msra.mxu0 %v628
        %875 = vmatpush.bf16.msra.mxu0 %v622
        %876 = vmatpush.bf16.msra.mxu0 %v616
        %877 = vmatpush.bf16.msra.mxu0 %v610
        %878 = vmatpush.bf16.msra.mxu0 %v604
        %879 = vmatpush.bf16.msra.mxu0 %v598
        %880 = vmatpush.bf16.msra.mxu0 %v592
        %881 = vmatpush.bf16.msra.mxu0 %v586
        %882 = vmatmul.bf16.gmra.mxu0 %v327
        %v883 = vpop.f32.mrf.mxu0
        %v884 = vadd.f32 0.0, %v883
        %v885 = vpop.f32.mrf.mxu0
        %886 = vdwg.mxu0
        %887 = vmatpush.bf16.msra.mxu0 0
        %888 = vmatpush.bf16.msra.mxu0 0
        %889 = vmatpush.bf16.msra.mxu0 %v765
        %890 = vmatpush.bf16.msra.mxu0 %v658
        %891 = vmatpush.bf16.msra.mxu0 %v652
        %892 = vmatpush.bf16.msra.mxu0 %v646
        %893 = vmatpush.bf16.msra.mxu0 %v640
        %894 = vmatpush.bf16.msra.mxu0 %v634
        %895 = vmatmul.bf16.gmra.mxu0 %v746
        %v896 = vpop.f32.mrf.mxu0
        %v897 = vadd.f32 %v884, %v896
        %v898 = vpop.f32.mrf.mxu0
        %899 = vdwg.mxu0
        %900 = vmatpush.bf16.msra.mxu0 %v629
        %901 = vmatpush.bf16.msra.mxu0 %v623
        %902 = vmatpush.bf16.msra.mxu0 %v617
        %903 = vmatpush.bf16.msra.mxu0 %v611
        %904 = vmatpush.bf16.msra.mxu0 %v605
        %905 = vmatpush.bf16.msra.mxu0 %v599
        %906 = vmatpush.bf16.msra.mxu0 %v593
        %907 = vmatpush.bf16.msra.mxu0 %v587
        %908 = vmatmul.bf16.gmra.mxu0 %v327
        %v909 = vpop.f32.mrf.mxu0
        %v910 = vadd.f32 0.0, %v909
        %v911 = vpop.f32.mrf.mxu0
        %912 = vdwg.mxu0
        %913 = vmatpush.bf16.msra.mxu0 0
        %914 = vmatpush.bf16.msra.mxu0 0
        %915 = vmatpush.bf16.msra.mxu0 %v768
        %916 = vmatpush.bf16.msra.mxu0 %v659
        %917 = vmatpush.bf16.msra.mxu0 %v653
        %918 = vmatpush.bf16.msra.mxu0 %v647
        %919 = vmatpush.bf16.msra.mxu0 %v641
        %920 = vmatpush.bf16.msra.mxu0 %v635
        %921 = vmatmul.bf16.gmra.mxu0 %v746
        %v922 = vpop.f32.mrf.mxu0
        %v923 = vadd.f32 %v910, %v922
        %v924 = vpop.f32.mrf.mxu0
        %925 = vdwg.mxu0
        %v927 = vperm.slane %v329, 0
        %v928 = vperm.slane %v329, 1
        %v929 = vperm.slane %v329, 2
        %v930 = vperm.slane %v329, 3
        %v931 = vperm.slane %v329, 4
        %v932 = vperm.slane %v329, 5
        %v939 = vadd.f32 %v927, %v793
        %v940 = vadd.f32 %v928, %v819
        %v941 = vadd.f32 %v929, %v845
        %v942 = vadd.f32 %v930, %v871
        %v943 = vadd.f32 %v931, %v897
        %v944 = vadd.f32 %v932, %v923
        %v951 = vrot.slane %v940, 6
        %v952 = vrot.slane %v941, 4
        %v953 = vrot.slane %v942, 2
        %v954 = vrot.slane %v944, 6
        %vm955 = vcmask 1041408
        %v956 = vsel %vm955, %v939, %v951
        %vm957 = vcmask 1045508
        %v958 = vsel %vm957, %v952, %v953
        %v959 = vsel %vm748, %v956, %v958
        %v960 = vsel %vm955, %v943, %v954
        %963 = vst [vmem:[%s233] sm:$0xff] %v959
        %964 = vst [vmem:[%s233 + $0x8] sm:$0xf] %v960
        %s965 = smul.u32 6, %s20
        %p966 = scmp.lt.s32.totalorder %s965, 23
        %s967 = scalar_select %p966, %s965, 23
        %s968 = smul.addr %s967, 2
        %s969 = scalar_lea.vmem %s3, %s968
        // Predicated region
        $region41: #{smpl_layer_forward.2} parent=31 // pred_check
          %p970 = pneg %p111
        $region42: #{smpl_layer_forward.2} parent=31 // pred_check_branch
          %972 = sbr.rel (%p970) target = $region44
        $region43: #{smpl_layer_forward.2} parent=31 // pred_region
          %s973 = smul.u32 6, %s20
        $region44: #{smpl_layer_forward.2} parent=31 // pred_fallthru
          _
      $region32: #{smpl_layer_forward.2} parent=5 // pred_fallthru
        _
      %p974 = scmp.le.s32.totalorder 2, %s15
      // Predicated region
      $region45: #{smpl_layer_forward.2} parent=5 // pred_check
        %p975 = pneg %p974
      $region46: #{smpl_layer_forward.2} parent=5 // pred_check_branch
        %977 = sbr.rel (%p975) target = $region48
      $region47: #{smpl_layer_forward.2} parent=5 // pred_region
        %s978 = ssub.s32 %s15, 2
        // Predicated region
        $region49: #{smpl_layer_forward.2} parent=47 // pred_check
          %p979 = pneg %p117
        $region50: #{smpl_layer_forward.2} parent=47 // pred_check_branch
          %981 = sbr.rel (%p979) target = $region52
        $region51: #{smpl_layer_forward.2} parent=47 // pred_region
          %s982 = smul.u32 6, %s21
          %p983 = scmp.lt.s32.totalorder %s982, 23
          %s984 = scalar_select %p983, %s982, 23
          %s985 = smul.addr %s984, 2
          %s986 = scalar_lea.vmem %s3, %s985
        $region52: #{smpl_layer_forward.2} parent=47 // pred_fallthru
          _
      $region48: #{smpl_layer_forward.2} parent=5 // pred_fallthru
        _
    $region6: #{smpl_layer_forward.2} parent=1 // loop_footer
      %s19 = sadd.s32 1, %s15
    $region7: #{smpl_layer_forward.2} parent=1 // loop_footer_branch
      %14 = sbr.rel target = $region3
    $region8: #{smpl_layer_forward.2} parent=1 // loop_exit
      _
    %987 = vsyncpa [#allocation3], 1
    %s988 = scalar_lea.sflag [#allocation3], 1
    %989 = vsyncpa %s988, 1
    %990 = vsyncpa [#allocation5], 1
    %s991 = scalar_lea.sflag [#allocation5], 1
    %992 = vsyncpa %s991, 1

// kernel: smpl_layer_forward.3
$region0: #{smpl_layer_forward.3}
  #allocation0 [shape = 'u32[]', space=smem, size = 0x4, offset = 0x4, fixed_abs, tag = 'smem constant byte address 0x4 - core index']
  #allocation1 [shape = 'u32[72,128]{1,0:T(1,128)}', space=vmem, size = 0x9000, scoped, tag = 'internal scratch']
  %s0 = inlined_call_operand.vmem [shape: f32[24,25], index: 0, kind: input, shape index: {}]
  %s1 = inlined_call_operand.vmem [shape: f32[25,1024], index: 1, kind: input, shape index: {}]
  %s2 = inlined_call_operand.vmem [shape: f32[2,3,1024], index: 2, kind: input, shape index: {}]
  %s3 = inlined_call_operand.vmem [shape: f32[2,3,1024], index: 3, kind: output, shape index: {}]
  %s4 = sld [smem:[#allocation0]]
  $region110: #{smpl_layer_forward.3} parent=0
    _
  %s6 = ssub.s32 1, %s4
  %s7 = scalar_select 0, %s6, %s4
  $region1: #{smpl_layer_forward.3} parent=0
    #allocation2 [shape = 'u8[131072]{0}', space=vmem, size = 0x20000, scoped, tag = 'input window, operand 1']
    #allocation3 [shape = 'u8[32768]{0}', space=vmem, size = 0x8000, scoped, tag = 'input window, operand 2']
    #allocation4 [shape = 'u8[32768]{0}', space=vmem, size = 0x8000, scoped, tag = 'output window, operand 0']
    loop: start=0, step=1, limit=4
    $region2: #{smpl_layer_forward.3} parent=1 // loop_pre_header
      _
    $region3: #{smpl_layer_forward.3} parent=1 // loop_header
      %s9 = sphi 0, %s13
      %p10 = scmp.ge.s32.totalorder %s9, 4
      %s17 = sphi 0, %s17
      %s19 = sphi 0, %s17
      %s20 = sphi 0, %s19
      %s34 = sphi 0, %s20
      %s40 = sphi 0, %s42
      %s43 = sphi 0, %s40
      %s44 = sphi 0, %s43
      %s60 = sphi 0, %s44
      %s66 = sphi 0, %s68
      %s69 = sphi 0, %s66
      %s70 = sphi 0, %s69
      %s86 = sphi 0, %s70
      %s92 = sphi 0, %s94
      %s95 = sphi 0, %s92
      %s96 = sphi 0, %s95
      %s112 = sphi 0, %s96
    $region4: #{smpl_layer_forward.3} parent=1 // loop_header_branch
      %12 = sbr.rel (%p10) target = $region8
    $region5: #{smpl_layer_forward.3} parent=1 // loop_body
      %s14 = ssub.s32 %s9, 1
      %s15 = ssub.s32 %s9, 2
      %s16 = sadd.s32 %s9, 1
      %s18 = sadd.s32 %s17, 1
      %p21 = scmp.eq.s32.totalorder %s9, 1
      %p22 = scmp.ne.s32.totalorder %s17, %s19
      %p23 = scmp.eq.s32.totalorder %s9, 0
      %p24 = por %p22, %p23
      %p25 = scmp.ne.s32.totalorder %s17, %s19
      %p26 = scmp.eq.s32.totalorder %s14, 1
      %p27 = por %p25, %p26
      %p28 = scmp.ne.s32.totalorder %s19, %s20
      %p29 = scmp.eq.s32.totalorder %s14, 0
      %p30 = por %p28, %p29
      %p31 = scmp.ne.s32.totalorder %s19, %s20
      %p32 = scmp.eq.s32.totalorder %s15, 1
      %p33 = por %p31, %p32
      %p35 = scmp.ne.s32.totalorder %s20, %s34
      %p36 = scmp.eq.s32.totalorder %s15, 0
      %p37 = por %p35, %p36
      %s38 = ssub.s32 %s9, %s16
      %p39 = scmp.eq.s32.totalorder %s38, 0
      %s41 = sadd.s32 %s40, 1
      %s42 = scalar_select %p39, %s40, %s41
      %p45 = pneg %p39
      %p46 = scmp.eq.s32.totalorder %s9, 1
      %p47 = por %p45, %p46
      %p48 = scmp.ne.s32.totalorder %s40, %s43
      %p49 = scmp.eq.s32.totalorder %s9, 0
      %p50 = por %p48, %p49
      %p51 = scmp.ne.s32.totalorder %s40, %s43
      %p52 = scmp.eq.s32.totalorder %s14, 1
      %p53 = por %p51, %p52
      %p54 = scmp.ne.s32.totalorder %s43, %s44
      %p55 = scmp.eq.s32.totalorder %s14, 0
      %p56 = por %p54, %p55
      %p57 = scmp.ne.s32.totalorder %s43, %s44
      %p58 = scmp.eq.s32.totalorder %s15, 1
      %p59 = por %p57, %p58
      %p61 = scmp.ne.s32.totalorder %s44, %s60
      %p62 = scmp.eq.s32.totalorder %s15, 0
      %p63 = por %p61, %p62
      %s64 = ssub.s32 %s9, %s16
      %p65 = scmp.eq.s32.totalorder %s64, 0
      %s67 = sadd.s32 %s66, 1
      %s68 = scalar_select %p65, %s66, %s67
      %p71 = pneg %p65
      %p72 = scmp.eq.s32.totalorder %s9, 1
      %p73 = por %p71, %p72
      %p74 = scmp.ne.s32.totalorder %s66, %s69
      %p75 = scmp.eq.s32.totalorder %s9, 0
      %p76 = por %p74, %p75
      %p77 = scmp.ne.s32.totalorder %s66, %s69
      %p78 = scmp.eq.s32.totalorder %s14, 1
      %p79 = por %p77, %p78
      %p80 = scmp.ne.s32.totalorder %s69, %s70
      %p81 = scmp.eq.s32.totalorder %s14, 0
      %p82 = por %p80, %p81
      %p83 = scmp.ne.s32.totalorder %s69, %s70
      %p84 = scmp.eq.s32.totalorder %s15, 1
      %p85 = por %p83, %p84
      %p87 = scmp.ne.s32.totalorder %s70, %s86
      %p88 = scmp.eq.s32.totalorder %s15, 0
      %p89 = por %p87, %p88
      %s90 = ssub.s32 %s9, %s16
      %p91 = scmp.eq.s32.totalorder %s90, 0
      %s93 = sadd.s32 %s92, 1
      %s94 = scalar_select %p91, %s92, %s93
      %p97 = pneg %p91
      %p98 = scmp.eq.s32.totalorder %s9, 1
      %p99 = por %p97, %p98
      %p100 = scmp.ne.s32.totalorder %s92, %s95
      %p101 = scmp.eq.s32.totalorder %s9, 0
      %p102 = por %p100, %p101
      %p103 = scmp.ne.s32.totalorder %s92, %s95
      %p104 = scmp.eq.s32.totalorder %s14, 1
      %p105 = por %p103, %p104
      %p106 = scmp.ne.s32.totalorder %s95, %s96
      %p107 = scmp.eq.s32.totalorder %s14, 0
      %p108 = por %p106, %p107
      %p109 = scmp.ne.s32.totalorder %s95, %s96
      %p110 = scmp.eq.s32.totalorder %s15, 1
      %p111 = por %p109, %p110
      %p113 = scmp.ne.s32.totalorder %s96, %s112
      %p114 = scmp.eq.s32.totalorder %s15, 0
      %p115 = por %p113, %p114
      %p116 = scmp.le.s32.totalorder 1, %s9
      %p117 = scmp.lt.s32.totalorder %s9, 3
      %p118 = pnand %p116, %p117
      %p119 = pneg %p118
      // Predicated region
      $region9: #{smpl_layer_forward.3} parent=5 // pred_check
        _
      $region10: #{smpl_layer_forward.3} parent=5 // pred_check_branch
        %121 = sbr.rel (%p118) target = $region12
      $region11: #{smpl_layer_forward.3} parent=5 // pred_region
        %s122 = ssub.s32 %s9, 1
        // Predicated region
        $region13: #{smpl_layer_forward.3} parent=11 // pred_check
          %p123 = pneg %p30
        $region14: #{smpl_layer_forward.3} parent=11 // pred_check_branch
          %125 = sbr.rel (%p123) target = $region16
        $region15: #{smpl_layer_forward.3} parent=11 // pred_region
          _
        $region16: #{smpl_layer_forward.3} parent=11 // pred_fallthru
          _
      $region12: #{smpl_layer_forward.3} parent=5 // pred_fallthru
        _
      %p126 = scmp.lt.s32.totalorder %s9, 2
      // Predicated region
      $region17: #{smpl_layer_forward.3} parent=5 // pred_check
        %p127 = pneg %p126
      $region18: #{smpl_layer_forward.3} parent=5 // pred_check_branch
        %129 = sbr.rel (%p127) target = $region20
      $region19: #{smpl_layer_forward.3} parent=5 // pred_region
        // Predicated region
        $region21: #{smpl_layer_forward.3} parent=19 // pred_check
          %p130 = pneg %p50
        $region22: #{smpl_layer_forward.3} parent=19 // pred_check_branch
          %132 = sbr.rel (%p130) target = $region24
        $region23: #{smpl_layer_forward.3} parent=19 // pred_region
          %s133 = sand.u32 %s40, 1
          %s134 = sand.u32 %s40, 1
          %s135 = smul.addr %s134, 128
          %s136 = scalar_lea.vmem [#allocation2], %s135
          %s137 = smul.u32 4, %s9
          %s138 = smul.addr %s137, 8
          %s139 = scalar_lea.vmem %s1, %s138
          // Predicated region
          $region25: #{smpl_layer_forward.3} parent=23 // pred_check
            _
          $region26: #{smpl_layer_forward.3} parent=23 // pred_check_branch
            %141 = sbr.rel (0) target = $region28
          $region27: #{smpl_layer_forward.3} parent=23 // pred_region
            // Predicated region
            $region29: #{smpl_layer_forward.3} parent=27 // pred_check
              _
            $region30: #{smpl_layer_forward.3} parent=27 // pred_check_branch
              %143 = sbr.rel (0) target = $region32
            $region31: #{smpl_layer_forward.3} parent=27 // pred_region
              loop: start=0, step=1, limit=1
              $region33: #{smpl_layer_forward.3} parent=31 // loop_pre_header
                _
              $region34: #{smpl_layer_forward.3} parent=31 // loop_header
                %s145 = sphi 0, %s149
                %p146 = scmp.ge.s32.totalorder %s145, 1
                %s150 = sphi %s139, %s139
                %s151 = sphi %s136, %s136
              $region35: #{smpl_layer_forward.3} parent=31 // loop_header_branch
                %148 = sbr.rel (%p146) target = $region39
              $region36: #{smpl_layer_forward.3} parent=31 // loop_body
                %v152 = vld [vmem:[%s150] sm:$0xff]
                %153 = vst [vmem:[%s151] sm:$0xff] %v152
                %v154 = vld [vmem:[%s150 + $0x8] sm:$0xff]
                %155 = vst [vmem:[%s151 + $0x8] sm:$0xff] %v154
                %v156 = vld [vmem:[%s150 + $0x10] sm:$0xff]
                %157 = vst [vmem:[%s151 + $0x10] sm:$0xff] %v156
                %v158 = vld [vmem:[%s150 + $0x18] sm:$0xff]
                %159 = vst [vmem:[%s151 + $0x18] sm:$0xff] %v158
                %v160 = vld [vmem:[%s150 + $0x40] sm:$0xff]
                %161 = vst [vmem:[%s151 + $0x20] sm:$0xff] %v160
                %v162 = vld [vmem:[%s150 + $0x48] sm:$0xff]
                %163 = vst [vmem:[%s151 + $0x28] sm:$0xff] %v162
                %v164 = vld [vmem:[%s150 + $0x50] sm:$0xff]
                %165 = vst [vmem:[%s151 + $0x30] sm:$0xff] %v164
                %v166 = vld [vmem:[%s150 + $0x58] sm:$0xff]
                %167 = vst [vmem:[%s151 + $0x38] sm:$0xff] %v166
                %v168 = vld [vmem:[%s150 + $0x80] sm:$0xff]
                %169 = vst [vmem:[%s151 + $0x40] sm:$0xff] %v168
                %v170 = vld [vmem:[%s150 + $0x88] sm:$0xff]
                %171 = vst [vmem:[%s151 + $0x48] sm:$0xff] %v170
                %v172 = vld [vmem:[%s150 + $0x90] sm:$0xff]
                %173 = vst [vmem:[%s151 + $0x50] sm:$0xff] %v172
                %v174 = vld [vmem:[%s150 + $0x98] sm:$0xff]
                %175 = vst [vmem:[%s151 + $0x58] sm:$0xff] %v174
                %v176 = vld [vmem:[%s150 + $0xc0] sm:$0xff]
                %177 = vst [vmem:[%s151 + $0x60] sm:$0xff] %v176
                %v178 = vld [vmem:[%s150 + $0xc8] sm:$0xff]
                %179 = vst [vmem:[%s151 + $0x68] sm:$0xff] %v178
                %v180 = vld [vmem:[%s150 + $0xd0] sm:$0xff]
                %181 = vst [vmem:[%s151 + $0x70] sm:$0xff] %v180
                %v182 = vld [vmem:[%s150 + $0xd8] sm:$0xff]
                %183 = vst [vmem:[%s151 + $0x78] sm:$0xff] %v182
              $region37: #{smpl_layer_forward.3} parent=31 // loop_footer
                %s149 = sadd.s32 1, %s145
              $region38: #{smpl_layer_forward.3} parent=31 // loop_footer_branch
                %144 = sbr.rel target = $region34
              $region39: #{smpl_layer_forward.3} parent=31 // loop_exit
                _
            $region32: #{smpl_layer_forward.3} parent=27 // pred_fallthru
              _
            // Predicated region
            $region40: #{smpl_layer_forward.3} parent=27 // pred_check
              _
            $region41: #{smpl_layer_forward.3} parent=27 // pred_check_branch
              %185 = sbr.rel target = $region43
            $region42: #{smpl_layer_forward.3} parent=27 // pred_region
              _
            $region43: #{smpl_layer_forward.3} parent=27 // pred_fallthru
              _
          $region28: #{smpl_layer_forward.3} parent=23 // pred_fallthru
            _
          %186 = vnop
        $region24: #{smpl_layer_forward.3} parent=19 // pred_fallthru
          _
        // Predicated region
        $region44: #{smpl_layer_forward.3} parent=19 // pred_check
          %p187 = pneg %p76
        $region45: #{smpl_layer_forward.3} parent=19 // pred_check_branch
          %189 = sbr.rel (%p187) target = $region47
        $region46: #{smpl_layer_forward.3} parent=19 // pred_region
          %s190 = sand.u32 %s66, 1
          %s191 = sand.u32 %s66, 1
          %s192 = smul.addr %s191, 32
          %s193 = scalar_lea.vmem [#allocation3], %s192
          %s194 = smul.u32 4, %s9
          %s195 = smul.addr %s194, 4
          %s196 = scalar_lea.vmem %s2, %s195
          // Predicated region
          $region48: #{smpl_layer_forward.3} parent=46 // pred_check
            _
          $region49: #{smpl_layer_forward.3} parent=46 // pred_check_branch
            %198 = sbr.rel (0) target = $region51
          $region50: #{smpl_layer_forward.3} parent=46 // pred_region
            // Predicated region
            $region52: #{smpl_layer_forward.3} parent=50 // pred_check
              _
            $region53: #{smpl_layer_forward.3} parent=50 // pred_check_branch
              %200 = sbr.rel (0) target = $region55
            $region54: #{smpl_layer_forward.3} parent=50 // pred_region
              loop: start=0, step=1, limit=1
              $region56: #{smpl_layer_forward.3} parent=54 // loop_pre_header
                _
              $region57: #{smpl_layer_forward.3} parent=54 // loop_header
                %s202 = sphi 0, %s206
                %p203 = scmp.ge.s32.totalorder %s202, 1
                %s207 = sphi %s196, %s196
                %s208 = sphi %s193, %s193
              $region58: #{smpl_layer_forward.3} parent=54 // loop_header_branch
                %205 = sbr.rel (%p203) target = $region62
              $region59: #{smpl_layer_forward.3} parent=54 // loop_body
                %v209 = vld [vmem:[%s207] sm:$0xff]
                %210 = vst [vmem:[%s208] sm:$0xff] %v209
                %v211 = vld [vmem:[%s207 + $0x8] sm:$0xff]
                %212 = vst [vmem:[%s208 + $0x8] sm:$0xff] %v211
                %v213 = vld [vmem:[%s207 + $0x20] sm:$0xff]
                %214 = vst [vmem:[%s208 + $0x10] sm:$0xff] %v213
                %v215 = vld [vmem:[%s207 + $0x28] sm:$0xff]
                %216 = vst [vmem:[%s208 + $0x18] sm:$0xff] %v215
              $region60: #{smpl_layer_forward.3} parent=54 // loop_footer
                %s206 = sadd.s32 1, %s202
              $region61: #{smpl_layer_forward.3} parent=54 // loop_footer_branch
                %201 = sbr.rel target = $region57
              $region62: #{smpl_layer_forward.3} parent=54 // loop_exit
                _
            $region55: #{smpl_layer_forward.3} parent=50 // pred_fallthru
              _
            // Predicated region
            $region63: #{smpl_layer_forward.3} parent=50 // pred_check
              _
            $region64: #{smpl_layer_forward.3} parent=50 // pred_check_branch
              %218 = sbr.rel target = $region66
            $region65: #{smpl_layer_forward.3} parent=50 // pred_region
              _
            $region66: #{smpl_layer_forward.3} parent=50 // pred_fallthru
              _
          $region51: #{smpl_layer_forward.3} parent=46 // pred_fallthru
            _
          %219 = vnop
        $region47: #{smpl_layer_forward.3} parent=19 // pred_fallthru
          _
      $region20: #{smpl_layer_forward.3} parent=5 // pred_fallthru
        _
      %p220 = scmp.le.s32.totalorder 1, %s9
      %p221 = scmp.lt.s32.totalorder %s9, 3
      %p222 = pnand %p220, %p221
      %p223 = pneg %p222
      // Predicated region
      $region67: #{smpl_layer_forward.3} parent=5 // pred_check
        _
      $region68: #{smpl_layer_forward.3} parent=5 // pred_check_branch
        %225 = sbr.rel (%p222) target = $region70
      $region69: #{smpl_layer_forward.3} parent=5 // pred_region
        %s226 = ssub.s32 %s9, 1
        %s227 = sand.u32 %s43, 1
        %s228 = sand.u32 %s43, 1
        %s229 = smul.addr %s228, 128
        %s230 = scalar_lea.vmem [#allocation2], %s229
        // Predicated region
        $region71: #{smpl_layer_forward.3} parent=69 // pred_check
          %p231 = pneg %p56
        $region72: #{smpl_layer_forward.3} parent=69 // pred_check_branch
          %233 = sbr.rel (%p231) target = $region74
        $region73: #{smpl_layer_forward.3} parent=69 // pred_region
          _
        $region74: #{smpl_layer_forward.3} parent=69 // pred_fallthru
          _
        %s234 = sand.u32 %s69, 1
        %s235 = sand.u32 %s69, 1
        %s236 = smul.addr %s235, 32
        %s237 = scalar_lea.vmem [#allocation3], %s236
        // Predicated region
        $region75: #{smpl_layer_forward.3} parent=69 // pred_check
          %p238 = pneg %p82
        $region76: #{smpl_layer_forward.3} parent=69 // pred_check_branch
          %240 = sbr.rel (%p238) target = $region78
        $region77: #{smpl_layer_forward.3} parent=69 // pred_region
          _
        $region78: #{smpl_layer_forward.3} parent=69 // pred_fallthru
          _
        %p241 = pneg %p30
        %p242 = pneg %p27
        %s243 = sand.u32 %s43, 1
        %s244 = sand.u32 %s43, 1
        %s245 = smul.addr %s244, 128
        %s246 = scalar_lea.vmem [#allocation2], %s245
        %p247 = pneg %p56
        %p248 = pneg %p53
        %s249 = sand.u32 %s69, 1
        %s250 = sand.u32 %s69, 1
        %s251 = smul.addr %s250, 32
        %s252 = scalar_lea.vmem [#allocation3], %s251
        %p253 = pneg %p82
        %p254 = pneg %p79
        %p255 = pneg %p108
        %p256 = pneg %p105
        %s257 = sand.u32 %s95, 1
        %s258 = sand.u32 %s95, 1
        %s259 = smul.addr %s258, 32
        %s260 = scalar_lea.vmem [#allocation4], %s259
        %s261 = smul.u32 4, %s14
        %s262 = smul.u32 4, %s14
        %s263 = smul.u32 4, %s14
        %v264 = vld [vmem:[%s230] sm:$0xff]
        %v265 = vld [vmem:[%s230 + $0x8] sm:$0xff]
        %v266 = vld [vmem:[%s230 + $0x10] sm:$0xff]
        %v267 = vld [vmem:[%s230 + $0x18] sm:$0xff]
        %v268 = vld [vmem:[%s230 + $0x20] sm:$0xff]
        %v269 = vld [vmem:[%s230 + $0x28] sm:$0xff]
        %v270 = vld [vmem:[%s230 + $0x30] sm:$0xff]
        %v271 = vld [vmem:[%s230 + $0x38] sm:$0xff]
        %v272 = vld [vmem:[%s230 + $0x40] sm:$0xff]
        %v273 = vld [vmem:[%s230 + $0x48] sm:$0xff]
        %v274 = vld [vmem:[%s230 + $0x50] sm:$0xff]
        %v275 = vld [vmem:[%s230 + $0x58] sm:$0xff]
        %v276 = vld [vmem:[%s230 + $0x60] sm:$0x1]
        %v277 = vld [vmem:[%s230 + $0x68] sm:$0x1]
        %v278 = vld [vmem:[%s230 + $0x70] sm:$0x1]
        %v279 = vld [vmem:[%s230 + $0x78] sm:$0x1]
        %v280 = vld [vmem:[%s0] sm:$0xff]
        %v281 = vld [vmem:[%s0 + $0x8] sm:$0xff]
        %v282 = vld [vmem:[%s0 + $0x10] sm:$0xff]
        %vm283 = vcmask 203776
        %v285 = vsel %vm283, %v280, 0
        %v288 = vsel %vm283, %v281, 0
        %v291 = vsel %vm283, %v282, 0
        %vm293 = vcmask 1040384
        %v295 = vsel %vm293, %v276, 0
        %v298 = vsel %vm293, %v277, 0
        %v301 = vsel %vm293, %v278, 0
        %v304 = vsel %vm293, %v279, 0
        %306 = vmatpush.msra.mxu0 0.0
        %307 = vmatpush.msra.mxu0 0.0
        %308 = vmatpush.msra.mxu0 0.0
        %309 = vmatpush.msra.mxu0 0.0
        %310 = vmatpush.msra.mxu0 0.0
        %311 = vmatpush.msra.mxu0 0.0
        %312 = vmatpush.msra.mxu0 0.0
        %313 = vmatpush.msra.mxu0 0.0
        %314 = vmatpush.msra.mxu0 0.0
        %315 = vmatpush.msra.mxu0 0.0
        %316 = vmatpush.msra.mxu0 0.0
        %317 = vmatpush.msra.mxu0 0.0
        %318 = vmatpush.msra.mxu0 %v295
        %319 = vmatpush.msra.mxu0 %v272
        %320 = vmatpush.msra.mxu0 %v268
        %321 = vmatpush.msra.mxu0 %v264
        %322 = vmatmul.f32.gmra.mxu0 %v285
        %v323 = vpop.f32.mrf.mxu0
        %v324 = vadd.f32 0.0, %v323
        %325 = vmatmul.f32.gmra.mxu0 %v288
        %v326 = vpop.f32.mrf.mxu0
        %v327 = vadd.f32 0.0, %v326
        %328 = vmatmul.f32.gmra.mxu0 %v291
        %v329 = vpop.f32.mrf.mxu0
        %v330 = vadd.f32 0.0, %v329
        %331 = vdwg.mxu0
        %332 = vmatpush.msra.mxu0 0.0
        %333 = vmatpush.msra.mxu0 0.0
        %334 = vmatpush.msra.mxu0 0.0
        %335 = vmatpush.msra.mxu0 0.0
        %336 = vmatpush.msra.mxu0 0.0
        %337 = vmatpush.msra.mxu0 0.0
        %338 = vmatpush.msra.mxu0 0.0
        %339 = vmatpush.msra.mxu0 0.0
        %340 = vmatpush.msra.mxu0 0.0
        %341 = vmatpush.msra.mxu0 0.0
        %342 = vmatpush.msra.mxu0 0.0
        %343 = vmatpush.msra.mxu0 0.0
        %344 = vmatpush.msra.mxu0 %v298
        %345 = vmatpush.msra.mxu0 %v273
        %346 = vmatpush.msra.mxu0 %v269
        %347 = vmatpush.msra.mxu0 %v265
        %348 = vmatmul.f32.gmra.mxu0 %v285
        %v349 = vpop.f32.mrf.mxu0
        %v350 = vadd.f32 0.0, %v349
        %351 = vmatmul.f32.gmra.mxu0 %v288
        %v352 = vpop.f32.mrf.mxu0
        %v353 = vadd.f32 0.0, %v352
        %354 = vmatmul.f32.gmra.mxu0 %v291
        %v355 = vpop.f32.mrf.mxu0
        %v356 = vadd.f32 0.0, %v355
        %357 = vdwg.mxu0
        %358 = vmatpush.msra.mxu0 0.0
        %359 = vmatpush.msra.mxu0 0.0
        %360 = vmatpush.msra.mxu0 0.0
        %361 = vmatpush.msra.mxu0 0.0
        %362 = vmatpush.msra.mxu0 0.0
        %363 = vmatpush.msra.mxu0 0.0
        %364 = vmatpush.msra.mxu0 0.0
        %365 = vmatpush.msra.mxu0 0.0
        %366 = vmatpush.msra.mxu0 0.0
        %367 = vmatpush.msra.mxu0 0.0
        %368 = vmatpush.msra.mxu0 0.0
        %369 = vmatpush.msra.mxu0 0.0
        %370 = vmatpush.msra.mxu0 %v301
        %371 = vmatpush.msra.mxu0 %v274
        %372 = vmatpush.msra.mxu0 %v270
        %373 = vmatpush.msra.mxu0 %v266
        %374 = vmatmul.f32.gmra.mxu0 %v285
        %v375 = vpop.f32.mrf.mxu0
        %v376 = vadd.f32 0.0, %v375
        %377 = vmatmul.f32.gmra.mxu0 %v288
        %v378 = vpop.f32.mrf.mxu0
        %v379 = vadd.f32 0.0, %v378
        %380 = vmatmul.f32.gmra.mxu0 %v291
        %v381 = vpop.f32.mrf.mxu0
        %v382 = vadd.f32 0.0, %v381
        %383 = vdwg.mxu0
        %384 = vmatpush.msra.mxu0 0.0
        %385 = vmatpush.msra.mxu0 0.0
        %386 = vmatpush.msra.mxu0 0.0
        %387 = vmatpush.msra.mxu0 0.0
        %388 = vmatpush.msra.mxu0 0.0
        %389 = vmatpush.msra.mxu0 0.0
        %390 = vmatpush.msra.mxu0 0.0
        %391 = vmatpush.msra.mxu0 0.0
        %392 = vmatpush.msra.mxu0 0.0
        %393 = vmatpush.msra.mxu0 0.0
        %394 = vmatpush.msra.mxu0 0.0
        %395 = vmatpush.msra.mxu0 0.0
        %396 = vmatpush.msra.mxu0 %v304
        %397 = vmatpush.msra.mxu0 %v275
        %398 = vmatpush.msra.mxu0 %v271
        %399 = vmatpush.msra.mxu0 %v267
        %400 = vmatmul.f32.gmra.mxu0 %v285
        %v401 = vpop.f32.mrf.mxu0
        %v402 = vadd.f32 0.0, %v401
        %403 = vmatmul.f32.gmra.mxu0 %v288
        %v404 = vpop.f32.mrf.mxu0
        %v405 = vadd.f32 0.0, %v404
        %406 = vmatmul.f32.gmra.mxu0 %v291
        %v407 = vpop.f32.mrf.mxu0
        %v408 = vadd.f32 0.0, %v407
        %409 = vdwg.mxu0
        %v410 = vld [vmem:[%s237] sm:$0x77]
        %v411 = vld [vmem:[%s237 + $0x8] sm:$0x77]
        %v412 = vld [vmem:[%s237 + $0x10] sm:$0x77]
        %v413 = vld [vmem:[%s237 + $0x18] sm:$0x77]
        %v416 = vperm.slane %v410, 0
        %v417 = vperm.slane %v410, 4
        %v418 = vperm.slane %v411, 0
        %v419 = vperm.slane %v411, 4
        %v424 = vperm.slane %v416, 0
        %v425 = vperm.slane %v417, 0
        %v426 = vperm.slane %v418, 0
        %v427 = vperm.slane %v419, 0
        %v428 = vmul.f32 %v324, %v424
        %v429 = vmul.f32 %v350, %v425
        %v430 = vmul.f32 %v376, %v426
        %v431 = vmul.f32 %v402, %v427
        %v432 = vperm.slane %v410, 1
        %v433 = vperm.slane %v410, 5
        %v434 = vperm.slane %v411, 1
        %v435 = vperm.slane %v411, 5
        %v440 = vperm.slane %v432, 1
        %v441 = vperm.slane %v433, 1
        %v442 = vperm.slane %v434, 1
        %v443 = vperm.slane %v435, 1
        %v444 = vmul.f32 %v324, %v440
        %v445 = vmul.f32 %v350, %v441
        %v446 = vmul.f32 %v376, %v442
        %v447 = vmul.f32 %v402, %v443
        %v452 = vrot.slane %v444, 3
        %v453 = vrot.slane %v445, 3
        %v454 = vrot.slane %v446, 3
        %v455 = vrot.slane %v447, 3
        %v460 = vadd.f32 %v428, %v452
        %v461 = vadd.f32 %v429, %v453
        %v462 = vadd.f32 %v430, %v454
        %v463 = vadd.f32 %v431, %v455
        %v464 = vperm.slane %v410, 2
        %v465 = vperm.slane %v410, 6
        %v466 = vperm.slane %v411, 2
        %v467 = vperm.slane %v411, 6
        %v472 = vperm.slane %v464, 2
        %v473 = vperm.slane %v465, 2
        %v474 = vperm.slane %v466, 2
        %v475 = vperm.slane %v467, 2
        %v476 = vmul.f32 %v324, %v472
        %v477 = vmul.f32 %v350, %v473
        %v478 = vmul.f32 %v376, %v474
        %v479 = vmul.f32 %v402, %v475
        %v480 = vmul.f32 %v327, %v472
        %v481 = vmul.f32 %v353, %v473
        %v482 = vmul.f32 %v379, %v474
        %v483 = vmul.f32 %v405, %v475
        %vm492 = vcmask 1041408
        %v493 = vrot.slane %v476, 6
        %v494 = vrot.slane %v480, 6
        %v495 = vsel %vm492, %v493, %v494
        %v496 = vrot.slane %v477, 6
        %v497 = vrot.slane %v481, 6
        %v498 = vsel %vm492, %v496, %v497
        %v499 = vrot.slane %v478, 6
        %v500 = vrot.slane %v482, 6
        %v501 = vsel %vm492, %v499, %v500
        %v502 = vrot.slane %v479, 6
        %v503 = vrot.slane %v483, 6
        %v504 = vsel %vm492, %v502, %v503
        %v509 = vadd.f32 %v460, %v495
        %v510 = vadd.f32 %v461, %v498
        %v511 = vadd.f32 %v462, %v501
        %v512 = vadd.f32 %v463, %v504
        %v517 = vrot.slane %v327, 1
        %v518 = vrot.slane %v353, 1
        %v519 = vrot.slane %v379, 1
        %v520 = vrot.slane %v405, 1
        %v525 = vadd.f32 %v509, %v517
        %v526 = vadd.f32 %v510, %v518
        %v527 = vadd.f32 %v511, %v519
        %v528 = vadd.f32 %v512, %v520
        %v533 = vrot.slane %v526, 4
        %v534 = vrot.slane %v528, 4
        %vm535 = vcmask 1043456
        %v536 = vsel %vm535, %v525, %v533
        %v537 = vsel %vm535, %v527, %v534
        %540 = vst [vmem:[%s260] sm:$0x77] %v536
        %541 = vst [vmem:[%s260 + $0x8] sm:$0x77] %v537
        %v544 = vperm.slane %v412, 0
        %v545 = vperm.slane %v412, 4
        %v546 = vperm.slane %v413, 0
        %v547 = vperm.slane %v413, 4
        %v552 = vperm.slane %v544, 0
        %v553 = vperm.slane %v545, 0
        %v554 = vperm.slane %v546, 0
        %v555 = vperm.slane %v547, 0
        %v556 = vmul.f32 %v327, %v552
        %v557 = vmul.f32 %v353, %v553
        %v558 = vmul.f32 %v379, %v554
        %v559 = vmul.f32 %v405, %v555
        %v560 = vperm.slane %v412, 1
        %v561 = vperm.slane %v412, 5
        %v562 = vperm.slane %v413, 1
        %v563 = vperm.slane %v413, 5
        %v568 = vperm.slane %v560, 1
        %v569 = vperm.slane %v561, 1
        %v570 = vperm.slane %v562, 1
        %v571 = vperm.slane %v563, 1
        %v572 = vmul.f32 %v327, %v568
        %v573 = vmul.f32 %v353, %v569
        %v574 = vmul.f32 %v379, %v570
        %v575 = vmul.f32 %v405, %v571
        %v576 = vmul.f32 %v330, %v568
        %v577 = vmul.f32 %v356, %v569
        %v578 = vmul.f32 %v382, %v570
        %v579 = vmul.f32 %v408, %v571
        %vm588 = vcmask 1044480
        %v589 = vrot.slane %v572, 3
        %v590 = vrot.slane %v576, 3
        %v591 = vsel %vm588, %v589, %v590
        %v592 = vrot.slane %v573, 3
        %v593 = vrot.slane %v577, 3
        %v594 = vsel %vm588, %v592, %v593
        %v595 = vrot.slane %v574, 3
        %v596 = vrot.slane %v578, 3
        %v597 = vsel %vm588, %v595, %v596
        %v598 = vrot.slane %v575, 3
        %v599 = vrot.slane %v579, 3
        %v600 = vsel %vm588, %v598, %v599
        %v605 = vadd.f32 %v556, %v591
        %v606 = vadd.f32 %v557, %v594
        %v607 = vadd.f32 %v558, %v597
        %v608 = vadd.f32 %v559, %v600
        %v609 = vperm.slane %v412, 2
        %v610 = vperm.slane %v412, 6
        %v611 = vperm.slane %v413, 2
        %v612 = vperm.slane %v413, 6
        %v617 = vperm.slane %v609, 2
        %v618 = vperm.slane %v610, 2
        %v619 = vperm.slane %v611, 2
        %v620 = vperm.slane %v612, 2
        %v621 = vmul.f32 %v330, %v617
        %v622 = vmul.f32 %v356, %v618
        %v623 = vmul.f32 %v382, %v619
        %v624 = vmul.f32 %v408, %v620
        %v629 = vrot.slane %v621, 6
        %v630 = vrot.slane %v622, 6
        %v631 = vrot.slane %v623, 6
        %v632 = vrot.slane %v624, 6
        %v637 = vadd.f32 %v605, %v629
        %v638 = vadd.f32 %v606, %v630
        %v639 = vadd.f32 %v607, %v631
        %v640 = vadd.f32 %v608, %v632
        %v645 = vrot.slane %v330, 1
        %v646 = vrot.slane %v356, 1
        %v647 = vrot.slane %v382, 1
        %v648 = vrot.slane %v408, 1
        %v653 = vadd.f32 %v637, %v645
        %v654 = vadd.f32 %v638, %v646
        %v655 = vadd.f32 %v639, %v647
        %v656 = vadd.f32 %v640, %v648
        %661 = vst.sshfl [vmem:[#allocation1] sm:$0xff pattern:$0x75316420] %v653
        %662 = vst.sshfl [vmem:[#allocation1 + $0x8] sm:$0xff pattern:$0x75316420] %v654
        %663 = vst.sshfl [vmem:[#allocation1 + $0x10] sm:$0xff pattern:$0x75316420] %v655
        %664 = vst.sshfl [vmem:[#allocation1 + $0x18] sm:$0xff pattern:$0x75316420] %v656
        %s665 = scalar_lea.vmem [#allocation1], 1
        %v666 = vld [vmem:[%s665] ss:$2 sm:$0xff]
        %s667 = scalar_lea.vmem [#allocation1], 17
        %v668 = vld [vmem:[%s667] ss:$2 sm:$0xff]
        %s671 = scalar_lea.vmem %s260, 16 [#allocation4]
        %672 = vst [vmem:[%s671] sm:$0x77] %v666
        %673 = vst [vmem:[%s671 + $0x8] sm:$0x77] %v668
        %s674 = sand.u32 %s95, 1
        %s675 = sand.u32 %s95, 1
        %s676 = smul.addr %s675, 32
        %s677 = scalar_lea.vmem [#allocation4], %s676
        // Predicated region
        $region79: #{smpl_layer_forward.3} parent=69 // pred_check
          %p678 = pneg %p105
        $region80: #{smpl_layer_forward.3} parent=69 // pred_check_branch
          %680 = sbr.rel (%p678) target = $region82
        $region81: #{smpl_layer_forward.3} parent=69 // pred_region
          %s681 = smul.u32 4, %s14
          %s682 = smul.addr %s681, 4
          %s683 = scalar_lea.vmem %s3, %s682
          // Predicated region
          $region83: #{smpl_layer_forward.3} parent=81 // pred_check
            _
          $region84: #{smpl_layer_forward.3} parent=81 // pred_check_branch
            %685 = sbr.rel (0) target = $region86
          $region85: #{smpl_layer_forward.3} parent=81 // pred_region
            // Predicated region
            $region87: #{smpl_layer_forward.3} parent=85 // pred_check
              _
            $region88: #{smpl_layer_forward.3} parent=85 // pred_check_branch
              %687 = sbr.rel (0) target = $region90
            $region89: #{smpl_layer_forward.3} parent=85 // pred_region
              loop: start=0, step=1, limit=1
              $region91: #{smpl_layer_forward.3} parent=89 // loop_pre_header
                _
              $region92: #{smpl_layer_forward.3} parent=89 // loop_header
                %s689 = sphi 0, %s693
                %p690 = scmp.ge.s32.totalorder %s689, 1
                %s694 = sphi %s677, %s677
                %s695 = sphi %s683, %s683
              $region93: #{smpl_layer_forward.3} parent=89 // loop_header_branch
                %692 = sbr.rel (%p690) target = $region97
              $region94: #{smpl_layer_forward.3} parent=89 // loop_body
                %v696 = vld [vmem:[%s694] sm:$0xff]
                %697 = vst [vmem:[%s695] sm:$0xff] %v696
                %v698 = vld [vmem:[%s694 + $0x8] sm:$0xff]
                %699 = vst [vmem:[%s695 + $0x8] sm:$0xff] %v698
                %v700 = vld [vmem:[%s694 + $0x10] sm:$0xff]
                %701 = vst [vmem:[%s695 + $0x20] sm:$0xff] %v700
                %v702 = vld [vmem:[%s694 + $0x18] sm:$0xff]
                %703 = vst [vmem:[%s695 + $0x28] sm:$0xff] %v702
              $region95: #{smpl_layer_forward.3} parent=89 // loop_footer
                %s693 = sadd.s32 1, %s689
              $region96: #{smpl_layer_forward.3} parent=89 // loop_footer_branch
                %688 = sbr.rel target = $region92
              $region97: #{smpl_layer_forward.3} parent=89 // loop_exit
                _
            $region90: #{smpl_layer_forward.3} parent=85 // pred_fallthru
              _
            // Predicated region
            $region98: #{smpl_layer_forward.3} parent=85 // pred_check
              _
            $region99: #{smpl_layer_forward.3} parent=85 // pred_check_branch
              %705 = sbr.rel target = $region101
            $region100: #{smpl_layer_forward.3} parent=85 // pred_region
              _
            $region101: #{smpl_layer_forward.3} parent=85 // pred_fallthru
              _
          $region86: #{smpl_layer_forward.3} parent=81 // pred_fallthru
            _
          %706 = vnop
        $region82: #{smpl_layer_forward.3} parent=69 // pred_fallthru
          _
      $region70: #{smpl_layer_forward.3} parent=5 // pred_fallthru
        _
      %p707 = scmp.le.s32.totalorder 2, %s9
      // Predicated region
      $region102: #{smpl_layer_forward.3} parent=5 // pred_check
        %p708 = pneg %p707
      $region103: #{smpl_layer_forward.3} parent=5 // pred_check_branch
        %710 = sbr.rel (%p708) target = $region105
      $region104: #{smpl_layer_forward.3} parent=5 // pred_region
        %s711 = ssub.s32 %s9, 2
        // Predicated region
        $region106: #{smpl_layer_forward.3} parent=104 // pred_check
          %p712 = pneg %p111
        $region107: #{smpl_layer_forward.3} parent=104 // pred_check_branch
          %714 = sbr.rel (%p712) target = $region109
        $region108: #{smpl_layer_forward.3} parent=104 // pred_region
          %s715 = sand.u32 %s96, 1
          %s716 = sand.u32 %s96, 1
          %s717 = smul.addr %s716, 32
          %s718 = scalar_lea.vmem [#allocation4], %s717
        $region109: #{smpl_layer_forward.3} parent=104 // pred_fallthru
          _
      $region105: #{smpl_layer_forward.3} parent=5 // pred_fallthru
        _
    $region6: #{smpl_layer_forward.3} parent=1 // loop_footer
      %s13 = sadd.s32 1, %s9
    $region7: #{smpl_layer_forward.3} parent=1 // loop_footer_branch
      %8 = sbr.rel target = $region3
    $region8: #{smpl_layer_forward.3} parent=1 // loop_exit
      _

</llo_original>
